<compile_context>
chip_gen: v5e
topology: v5e:2x2
jax: 0.10.0
libtpu: 0.0.40
codegen_flags: <defaults>
</compile_context>

<pallas_src>
import numpy as np
import jax
import jax.numpy as jnp
from jax.experimental import pallas as pl
from jax.experimental.pallas import tpu as pltpu


# ---------------------------------------------------------------------------
# Helpers
# ---------------------------------------------------------------------------
def _round_up(n, m):
    return ((n + m - 1) // m) * m


def _cdiv(a, b):
    return (a + b - 1) // b


def orthogonal_init(key, out_features, in_features, gain):
    """Same semantics as torch.nn.init.orthogonal_: QR of a Gaussian matrix."""
    rows, cols = out_features, in_features
    flat = jax.random.normal(key, (max(rows, cols), min(rows, cols)),
                             dtype=jnp.float32)
    q, r = jnp.linalg.qr(flat)
    q = q * jnp.sign(jnp.diag(r))
    if rows < cols:
        q = q.T
    return gain * q[:rows, :cols]


def build_linear_chain(key, sizes, gains):
    """torch layer_init-style chain: orthogonal weight, zero bias.
    Returns (key, [(W^T [in, out], b [out]), ...])."""
    assert len(gains) == len(sizes) - 1
    layers = []
    for li in range(len(sizes) - 1):
        key, sub = jax.random.split(key)
        d_in, d_out = sizes[li], sizes[li + 1]
        w = orthogonal_init(sub, d_out, d_in, gains[li])      # [out, in] torch layout
        b = jnp.zeros((d_out,), jnp.float32)
        layers.append((w.T, b))                               # store W^T = [in, out]
    return key, layers


def _chain_ref(x, layers, acts):
    """Pure-JAX reference for one Linear/activation chain."""
    h = x
    for (wt, b), a in zip(layers, acts):
        h = h @ wt + b
        if a == "tanh":
            h = jnp.tanh(h)
        elif a == "relu":
            h = jnp.maximum(h, 0.0)
    return h


# ---------------------------------------------------------------------------
# Fully fused forward kernel factory.
#
# Ref order: [obs, (priv), (contacts), (latent), w0, b0, w1, b1, ..., out]
# The weight list is built by _build_plan in exactly the order this kernel
# consumes it; `plan` is a static dict of Python ints/bools/tuples.
# ---------------------------------------------------------------------------
def _make_fused_kernel(plan):
    n_act = plan["n_act_inputs"]

    def kernel(*refs):
        act_refs = refs[:n_act]
        o_ref = refs[-1]
        w_refs = refs[n_act:-1]
        a_cur = [0]
        w_cur = [0]

        def next_act():
            r = act_refs[a_cur[0]][...]
            a_cur[0] += 1
            return r

        def next_w():
            r = w_refs[w_cur[0]][...]
            w_cur[0] += 1
            return r

        def mm(x, w):
            return jnp.dot(x, w, preferred_element_type=jnp.float32)

        obs = next_act()                                       # [TB, n_obs]
        priv = next_act() if plan["need_env"] else None
        contacts = next_act() if plan["need_cenc"] else None
        latent = next_act() if plan["use_latent"] else None

        def run_chain(h, acts):
            for a in acts:
                w = next_w()
                b = next_w()
                h = mm(h, w) + b
                if a == "tanh":
                    h = jnp.tanh(h)
                elif a == "relu":
                    h = jnp.maximum(h, 0.0)
            return h

        # Encoder features.  Their LAST layer weights were column-placed at
        # build time, so these come out [TB, P_OUT] with the real values in
        # their designated output columns and exact zeros elsewhere
        # (tanh(0) == 0), ready to be summed straight into the packed output.
        feats = {}
        if plan["need_env"]:
            feats["priv"] = run_chain(priv, ("tanh",) * plan["env_layers"])
        if plan["need_cenc"]:
            feats["contact"] = run_chain(contacts, ("relu", "tanh"))
        if plan["use_latent"]:
            feats["latent"] = latent

        def run_trunk():
            # First trunk layer via split weights: obs rows + one row-block per
            # extrin source (no cross-lane concat).
            acc = mm(obs, next_w())
            for name in plan["trunk_extra"]:
                acc = acc + mm(feats[name], next_w())
            h = jnp.tanh(acc + next_w())
            for _ in range(plan["trunk_layers"] - 1):
                w = next_w()
                b = next_w()
                h = jnp.tanh(mm(h, w) + b)
            return h

        # Heads (weights column-placed into the packed [mu | value | extrin]
        # layout), accumulated into one lane-dense [TB, P_OUT] result.
        if plan["shared"]:
            x = run_trunk()
            w = next_w()
            b = next_w()
            packed = mm(x, w) + b                              # mu | value
        else:
            xa = run_trunk()
            w = next_w()
            b = next_w()
            packed = mm(xa, w) + b                             # mu
            xc = run_trunk()
            w = next_w()
            b = next_w()
            packed = packed + mm(xc, w) + b                    # + value
        for name in plan["ext_out"]:
            packed = packed + feats[name]                      # + extrin_gt cols
        o_ref[...] = packed                                    # one 128-lane store

    return kernel


# ---------------------------------------------------------------------------
# ActorCriticSplit (JAX / Pallas version of the forward pass)
# ---------------------------------------------------------------------------
class ActorCriticSplitPallas:
    def __init__(self, key, cfg, max_tile_batch=1024):
        self.actions_num = cfg['actions_num']
        self.n_obs = cfg['input_shape'][0]
        self.units = list(cfg['actor_units'])
        self.priv_info = cfg['priv_info']
        self.priv_mlp_units = list(cfg['priv_mlp_units'])
        self.priv_info_dim = cfg['priv_info_dim']
        self.contact_info = cfg['gt_contacts_info']
        self.only_contact = cfg['only_contact']
        self.shared_parameters = cfg['shared_parameters']
        self.vt_policy = cfg['vt_policy']
        self.max_tile_batch = int(max_tile_batch)
        g = float(np.sqrt(2.0))

        mlp_input = self.n_obs
        self.env_chain = None
        self.cenc_chain = None
        self.contact_emb = 0
        if self.priv_info:
            mlp_input += self.priv_mlp_units[-1]
            key, self.env_chain = build_linear_chain(
                key, [self.priv_info_dim] + self.priv_mlp_units,
                [g] * len(self.priv_mlp_units))
            if self.contact_info:
                self.contact_mlp_units = list(cfg['contacts_mlp_units'])
                self.contact_emb = self.contact_mlp_units[-1]
                # ContactAE encoder: Linear(ncp,32) -> ReLU -> Linear(32,emb) -> Tanh
                key, self.cenc_chain = build_linear_chain(
                    key, [cfg['num_contact_points'], 32, self.contact_emb],
                    [1.0, 1.0])
                if not self.only_contact:
                    mlp_input += self.contact_emb

        if self.vt_policy:
            # TODO(synk): vt_policy student transformer (external Runner model /
            # image pipeline) has no in-script Pallas equivalent; only the
            # vt_policy=False path is implemented.
            raise NotImplementedError("vt_policy student model not supported")

        L = len(self.units)
        if self.shared_parameters:
            key, self.trunk_chain = build_linear_chain(
                key, [mlp_input] + self.units, [g] * L)
            self.actor_chain = None
            self.critic_chain = None
        else:
            key, self.actor_chain = build_linear_chain(
                key, [mlp_input] + self.units, [g] * L)
            key, self.critic_chain = build_linear_chain(
                key, [mlp_input] + self.units, [g] * L)
            self.trunk_chain = None
        key, self.value_chain = build_linear_chain(key, [self.units[-1], 1], [1.0])
        key, self.mu_chain = build_linear_chain(
            key, [self.units[-1], self.actions_num], [0.01])

        self.sigma = jnp.zeros((self.actions_num,), jnp.float32)
        self.mlp_input_shape = mlp_input
        self._fused_cache = {}

    # --- build the fused-kernel plan + flat weight list for one call shape ---
    def _build_plan(self, compute_ext, use_latent):
        an = self.actions_num
        p_emb = self.priv_mlp_units[-1] if self.priv_info else 0
        emb = self.contact_emb

        # extrin_gt output components (name, dim), in column order
        if compute_ext:
            if self.contact_info and self.only_contact:
                ext_components = (("contact", emb),)
            elif self.contact_info:
                ext_components = (("priv", p_emb), ("contact", emb))
            else:
                ext_components = (("priv", p_emb),)
        else:
            ext_components = ()
        ext_dim = sum(d for _, d in ext_components)

        need_env = any(n == "priv" for n, _ in ext_components)
        need_cenc = any(n == "contact" for n, _ in ext_components)

        # what feeds the trunk beyond the base obs
        if use_latent:
            trunk_extra = (("latent", self.mlp_input_shape - self.n_obs),)
        else:
            trunk_extra = ext_components

        p_out = _round_up(max(an + 1 + ext_dim, 1), 128)

        # packed-output column offsets of each extrin component
        ext_offsets = {}
        col = an + 1
        for name, d in ext_components:
            ext_offsets[name] = col
            col += d

        plan = dict(
            need_env=need_env, need_cenc=need_cenc, use_latent=use_latent,
            env_layers=len(self.env_chain) if need_env else 0,
            trunk_layers=len(self.units),
            trunk_extra=tuple(n for n, _ in trunk_extra),
            ext_out=tuple(n for n, _ in ext_components),
            ext_dim=ext_dim, shared=self.shared_parameters,
            an=an, p_out=p_out,
            n_act_inputs=1 + int(need_env) + int(need_cenc) + int(use_latent),
        )

        weights = []
        flops = [0]

        def add_layer(wt, b):
            weights.append(wt)
            weights.append(b.reshape(1, -1))
            flops[0] += 2 * int(wt.shape[0]) * int(wt.shape[1])

        def place_cols(wt, b, col0):
            d_out = wt.shape[1]
            wp = jnp.zeros((wt.shape[0], p_out), jnp.float32
                           ).at[:, col0:col0 + d_out].set(wt)
            bp = jnp.zeros((p_out,), jnp.float32).at[col0:col0 + d_out].set(b)
            return wp, bp

        def add_chain_placed(chain, out_col):
            # all layers as-is, except the LAST one whose output columns are
            # placed at `out_col` inside the packed [.., P_OUT] layout
            for li, (wt, b) in enumerate(chain):
                if li == len(chain) - 1:
                    wp, bp = place_cols(wt, b, out_col)
                    add_layer(wp, bp)
                else:
                    add_layer(wt, b)

        def add_trunk(chain):
            wt0, b0 = chain[0]
            u0 = int(wt0.shape[1])
            weights.append(wt0[:self.n_obs, :])
            flops[0] += 2 * self.n_obs * u0
            off_rows = self.n_obs
            for name, d in trunk_extra:
                w_piece = wt0[off_rows:off_rows + d, :]
                off_rows += d
                if name == "latent":
                    weights.append(w_piece)
                    flops[0] += 2 * d * u0
                else:
                    # reposition rows so they line up with the column-placed
                    # (P_OUT-wide) encoder feature that multiplies them
                    c = ext_offsets[name]
                    w_full = jnp.zeros((p_out, u0), jnp.float32
                                       ).at[c:c + d, :].set(w_piece)
                    weights.append(w_full)
                    flops[0] += 2 * p_out * u0
            assert off_rows == wt0.shape[0], (
                "trunk input split mismatch: obs/extrin dims don't add up to "
                "the actor/critic MLP input size")
            weights.append(b0.reshape(1, -1))
            for wt, b in chain[1:]:
                add_layer(wt, b)

        def add_head_placed(wt, b, col0):
            wp, bp = place_cols(wt, b, col0)
            add_layer(wp, bp)

        if need_env:
            add_chain_placed(self.env_chain, ext_offsets["priv"])
        if need_cenc:
            add_chain_placed(self.cenc_chain, ext_offsets["contact"])

        if self.shared_parameters:
            add_trunk(self.trunk_chain)
            wm, bm = self.mu_chain[0]
            wv, bv = self.value_chain[0]
            w_head = jnp.concatenate([wm, wv], axis=1)         # [u_last, an+1]
            b_head = jnp.concatenate([bm, bv], axis=0)
            add_head_placed(w_head, b_head, 0)                 # mu @ 0, value @ an
        else:
            add_trunk(self.actor_chain)
            wm, bm = self.mu_chain[0]
            add_head_placed(wm, bm, 0)
            add_trunk(self.critic_chain)
            wv, bv = self.value_chain[0]
            add_head_placed(wv, bv, an)

        # cost-estimate constants (advisory hint for the XLA scheduler)
        trans_per_row = 0
        if need_env:
            trans_per_row += sum(self.priv_mlp_units)
        if need_cenc:
            trans_per_row += emb
        trans_per_row += sum(self.units) * (1 if self.shared_parameters else 2)
        weight_bytes = int(sum(int(np.prod(w.shape)) * 4 for w in weights))
        act_width = self.n_obs
        if need_env:
            act_width += self.priv_info_dim
        if need_cenc:
            act_width += int(self.cenc_chain[0][0].shape[0])
        if use_latent:
            act_width += self.mlp_input_shape - self.n_obs
        cost = dict(flops_per_row=int(flops[0]),
                    trans_per_row=int(trans_per_row),
                    weight_bytes=weight_bytes,
                    row_bytes=4 * (act_width + p_out))

        kernel = _make_fused_kernel(plan)
        return plan, kernel, weights, cost

    # --- single fused pallas_call for the whole forward pass ----------------
    def _fused_forward(self, obs, priv, contacts, latent, compute_ext, use_latent):
        cache_key = (bool(compute_ext), bool(use_latent))
        if cache_key not in self._fused_cache:
            self._fused_cache[cache_key] = self._build_plan(*cache_key)
        plan, kernel, weights, cost = self._fused_cache[cache_key]

        obs = obs.astype(jnp.float32)
        B = obs.shape[0]
        # Batch tile: big enough to amortize per-grid-step overhead, but keep
        # >=2 grid steps when possible so both v7x TensorCores get work.
        # No host-side batch padding: the last block may be partial.
        if B <= 8:
            tb = B
        else:
            tb = max(8, min(self.max_tile_batch, _round_up(_cdiv(B, 2), 8)))
        n_tiles = _cdiv(B, tb)

        act_inputs = [obs]
        act_specs = [pl.BlockSpec((tb, obs.shape[1]), lambda i: (i, 0))]
        if plan["need_env"]:
            priv = priv.astype(jnp.float32)
            act_inputs.append(priv)
            act_specs.append(pl.BlockSpec((tb, priv.shape[1]), lambda i: (i, 0)))
        if plan["need_cenc"]:
            contacts = contacts.astype(jnp.float32)
            act_inputs.append(contacts)
            act_specs.append(pl.BlockSpec((tb, contacts.shape[1]), lambda i: (i, 0)))
        if plan["use_latent"]:
            latent = latent.astype(jnp.float32)
            act_inputs.append(latent)
            act_specs.append(pl.BlockSpec((tb, latent.shape[1]), lambda i: (i, 0)))

        # Weights/biases as full VMEM blocks, resident across all grid steps.
        w_specs = [pl.BlockSpec(w.shape, lambda i: (0, 0)) for w in weights]

        cost_estimate = pl.CostEstimate(
            flops=cost["flops_per_row"] * B,
            transcendentals=cost["trans_per_row"] * B,
            bytes_accessed=cost["weight_bytes"] + cost["row_bytes"] * B)

        packed = pl.pallas_call(
            kernel,
            out_shape=jax.ShapeDtypeStruct((B, plan["p_out"]), jnp.float32),
            grid=(n_tiles,),
            in_specs=act_specs + w_specs,
            out_specs=pl.BlockSpec((tb, plan["p_out"]), lambda i: (i, 0)),
            compiler_params=pltpu.CompilerParams(
                dimension_semantics=("parallel",)),
            cost_estimate=cost_estimate,
        )(*act_inputs, *weights)
        return packed, plan

    # --- Pallas-backed forward pass -----------------------------------------
    def actor_critic(self, obs_dict):
        obs = obs_dict['obs']
        compute_ext = self.priv_info and ('priv_info' in obs_dict)
        latent = obs_dict.get('latent', None)
        use_latent = latent is not None

        packed, plan = self._fused_forward(
            obs, obs_dict.get('priv_info', None), obs_dict.get('contacts', None),
            latent, compute_ext, use_latent)

        an = self.actions_num
        mu = packed[:, :an]
        value = packed[:, an:an + 1]
        extrin_gt = (packed[:, an + 1:an + 1 + plan["ext_dim"]]
                     if plan["ext_dim"] > 0 else None)
        extrin = latent
        logstd = jnp.broadcast_to(self.sigma, mu.shape)
        return mu, logstd, value, extrin, extrin_gt

    def forward(self, input_dict):
        """Mirrors the torch forward(); distribution math is elementwise JAX."""
        prev_actions = input_dict.get('prev_actions', None)
        mu, logstd, value, extrin, extrin_gt = self.actor_critic(input_dict)
        sigma = jnp.exp(logstd)
        entropy = jnp.sum(0.5 + 0.5 * jnp.log(2.0 * jnp.pi) + jnp.log(sigma), axis=-1)
        prev_neglogp = None
        if prev_actions is not None:
            z = (prev_actions - mu) / sigma
            prev_neglogp = jnp.squeeze(
                jnp.sum(0.5 * z * z + jnp.log(sigma) + 0.5 * jnp.log(2.0 * jnp.pi),
                        axis=1))
        return {'prev_neglogp': prev_neglogp, 'values': value, 'entropy': entropy,
                'mus': mu, 'sigmas': sigma, 'extrin': extrin, 'extrin_gt': extrin_gt}

    # --- Pure-JAX reference ----------------------------------------------------
    def actor_critic_ref(self, obs_dict):
        obs = obs_dict['obs']
        extrin, extrin_gt = None, None
        if self.priv_info and 'priv_info' in obs_dict:
            extrin_priv = _chain_ref(obs_dict['priv_info'], self.env_chain,
                                     ("tanh",) * len(self.env_chain))
            if self.contact_info:
                extrin_contact = _chain_ref(obs_dict['contacts'], self.cenc_chain,
                                            ("relu", "tanh"))
                if self.only_contact:
                    extrin_gt = extrin_contact
                else:
                    extrin_gt = jnp.concatenate([extrin_priv, extrin_contact], axis=-1)
            else:
                extrin_gt = extrin_priv
        if obs_dict.get('latent', None) is not None:
            extrin = obs_dict['latent']
            obs = jnp.concatenate([obs, extrin], axis=-1)
        elif self.priv_info:
            obs = jnp.concatenate([obs, extrin_gt], axis=-1)

        acts_t = ("tanh",) * len(self.units)
        if self.shared_parameters:
            x = _chain_ref(obs, self.trunk_chain, acts_t)
            mu = _chain_ref(x, self.mu_chain, ("none",))
            value = _chain_ref(x, self.value_chain, ("none",))
        else:
            xa = _chain_ref(obs, self.actor_chain, acts_t)
            mu = _chain_ref(xa, self.mu_chain, ("none",))
            xc = _chain_ref(obs, self.critic_chain, acts_t)
            value = _chain_ref(xc, self.value_chain, ("none",))
        logstd = jnp.broadcast_to(self.sigma, mu.shape)
        return mu, logstd, value, extrin, extrin_gt


# ---------------------------------------------------------------------------
# Self-test
# ---------------------------------------------------------------------------
if __name__ == "__main__":
    key = jax.random.PRNGKey(0)
    cfg = dict(
        actions_num=8,
        input_shape=(32,),
        actor_units=[64, 64, 32],
        priv_info=True,
        priv_mlp_units=[32, 8],
        priv_info_dim=16,
        gt_contacts_info=True,
        only_contact=False,
        contacts_mlp_units=[16],
        num_contact_points=12,
        shared_parameters=False,
        vt_policy=False,
    )

    k_param, k_data = jax.random.split(key)
    model = ActorCriticSplitPallas(k_param, cfg)

    def make_obs(k, batch):
        k1, k2, k3 = jax.random.split(k, 3)
        return {
            'obs': jax.random.normal(k1, (batch, cfg['input_shape'][0]), jnp.float32),
            'priv_info': jax.random.normal(k2, (batch, cfg['priv_info_dim']), jnp.float32),
            'contacts': jax.random.normal(k3, (batch, cfg['num_contact_points']), jnp.float32),
        }

    def check(m, obs_dict):
        mu, logstd, value, extrin, extrin_gt = m.actor_critic(obs_dict)
        jax.block_until_ready((mu, logstd, value))
        with jax.default_matmul_precision("highest"):
            mu_r, logstd_r, value_r, _, extrin_gt_r = m.actor_critic_ref(obs_dict)
        np.testing.assert_allclose(np.asarray(mu), np.asarray(mu_r), rtol=1e-4, atol=1e-5)
        np.testing.assert_allclose(np.asarray(logstd), np.asarray(logstd_r), rtol=1e-4, atol=1e-5)
        np.testing.assert_allclose(np.asarray(value), np.asarray(value_r), rtol=1e-4, atol=1e-5)
        if extrin_gt_r is not None:
            np.testing.assert_allclose(np.asarray(extrin_gt), np.asarray(extrin_gt_r),
                                       rtol=1e-4, atol=1e-5)
        return mu, value, extrin_gt

    kd = jax.random.split(k_data, 8)

    # 1) tiny batch (single full-dim block, no padding)
    od2 = make_obs(kd[0], 2)
    mu, value, extrin_gt = check(model, od2)
    assert mu.shape == (2, cfg['actions_num'])
    assert value.shape == (2, 1)
    assert extrin_gt.shape == (2, cfg['priv_mlp_units'][-1] + cfg['contacts_mlp_units'][-1])

    # 2) multi-tile grid with a partial last block (no host-side batch padding)
    od19 = make_obs(kd[1], 19)
    check(model, od19)

    # 3) latent path: latent replaces extrin_gt as the trunk's extra input
    lat_dim = cfg['priv_mlp_units'][-1] + cfg['contacts_mlp_units'][-1]
    od_lat = make_obs(kd[2], 3)
    od_lat['latent'] = jax.random.normal(kd[3], (3, lat_dim), jnp.float32)
    check(model, od_lat)

    # 4) shared-parameter variant (trunk + packed mu/value head, no contacts)
    cfg_sh = dict(cfg, shared_parameters=True, gt_contacts_info=False)
    model_sh = ActorCriticSplitPallas(kd[4], cfg_sh)
    od_sh = make_obs(kd[5], 5)
    check(model_sh, od_sh)

    # 5) full forward() path (distribution stats are plain elementwise JAX)
    fwd = model.forward(dict(od19, prev_actions=jax.random.normal(
        kd[6], (19, cfg['actions_num']), jnp.float32)))
    jax.block_until_ready(fwd['prev_neglogp'])
    assert fwd['mus'].shape == (19, cfg['actions_num'])
    assert np.all(np.isfinite(np.asarray(fwd['prev_neglogp'])))

    print("KERNEL_OK")
</pallas_src>

<mosaic_0001>
module attributes {stable_mosaic.version = 11 : i64} {
  func.func @kernel(%arg0: i32, %arg1: memref<2x32xf32, #tpu.memory_space<vmem>>, %arg2: memref<2x16xf32, #tpu.memory_space<vmem>>, %arg3: memref<2x12xf32, #tpu.memory_space<vmem>>, %arg4: memref<16x32xf32, #tpu.memory_space<vmem>>, %arg5: memref<1x32xf32, #tpu.memory_space<vmem>>, %arg6: memref<32x128xf32, #tpu.memory_space<vmem>>, %arg7: memref<1x128xf32, #tpu.memory_space<vmem>>, %arg8: memref<12x32xf32, #tpu.memory_space<vmem>>, %arg9: memref<1x32xf32, #tpu.memory_space<vmem>>, %arg10: memref<32x128xf32, #tpu.memory_space<vmem>>, %arg11: memref<1x128xf32, #tpu.memory_space<vmem>>, %arg12: memref<32x64xf32, #tpu.memory_space<vmem>>, %arg13: memref<128x64xf32, #tpu.memory_space<vmem>>, %arg14: memref<128x64xf32, #tpu.memory_space<vmem>>, %arg15: memref<1x64xf32, #tpu.memory_space<vmem>>, %arg16: memref<64x64xf32, #tpu.memory_space<vmem>>, %arg17: memref<1x64xf32, #tpu.memory_space<vmem>>, %arg18: memref<64x32xf32, #tpu.memory_space<vmem>>, %arg19: memref<1x32xf32, #tpu.memory_space<vmem>>, %arg20: memref<32x128xf32, #tpu.memory_space<vmem>>, %arg21: memref<1x128xf32, #tpu.memory_space<vmem>>, %arg22: memref<32x64xf32, #tpu.memory_space<vmem>>, %arg23: memref<128x64xf32, #tpu.memory_space<vmem>>, %arg24: memref<128x64xf32, #tpu.memory_space<vmem>>, %arg25: memref<1x64xf32, #tpu.memory_space<vmem>>, %arg26: memref<64x64xf32, #tpu.memory_space<vmem>>, %arg27: memref<1x64xf32, #tpu.memory_space<vmem>>, %arg28: memref<64x32xf32, #tpu.memory_space<vmem>>, %arg29: memref<1x32xf32, #tpu.memory_space<vmem>>, %arg30: memref<32x128xf32, #tpu.memory_space<vmem>>, %arg31: memref<1x128xf32, #tpu.memory_space<vmem>>, %arg32: memref<2x128xf32, #tpu.memory_space<vmem>>) attributes {dimension_semantics = [#tpu.dimension_semantics<parallel>], iteration_bounds = array<i64: 1>, scalar_prefetch = 0 : i64, scratch_operands = 0 : i64, tpu.core_type = #tpu.core_type<tc>, window_params = [{transform_indices = @transform_0, window_bounds = array<i64: 2, 32>}, {transform_indices = @transform_1, window_bounds = array<i64: 2, 16>}, {transform_indices = @transform_2, window_bounds = array<i64: 2, 12>}, {pipeline_mode = #tpu.pipeline_mode<synchronous>, transform_indices = @transform_3, window_bounds = array<i64: 16, 32>}, {pipeline_mode = #tpu.pipeline_mode<synchronous>, transform_indices = @transform_4, window_bounds = array<i64: 1, 32>}, {pipeline_mode = #tpu.pipeline_mode<synchronous>, transform_indices = @transform_5, window_bounds = array<i64: 32, 128>}, {pipeline_mode = #tpu.pipeline_mode<synchronous>, transform_indices = @transform_6, window_bounds = array<i64: 1, 128>}, {pipeline_mode = #tpu.pipeline_mode<synchronous>, transform_indices = @transform_7, window_bounds = array<i64: 12, 32>}, {pipeline_mode = #tpu.pipeline_mode<synchronous>, transform_indices = @transform_8, window_bounds = array<i64: 1, 32>}, {pipeline_mode = #tpu.pipeline_mode<synchronous>, transform_indices = @transform_9, window_bounds = array<i64: 32, 128>}, {pipeline_mode = #tpu.pipeline_mode<synchronous>, transform_indices = @transform_10, window_bounds = array<i64: 1, 128>}, {pipeline_mode = #tpu.pipeline_mode<synchronous>, transform_indices = @transform_11, window_bounds = array<i64: 32, 64>}, {pipeline_mode = #tpu.pipeline_mode<synchronous>, transform_indices = @transform_12, window_bounds = array<i64: 128, 64>}, {pipeline_mode = #tpu.pipeline_mode<synchronous>, transform_indices = @transform_13, window_bounds = array<i64: 128, 64>}, {pipeline_mode = #tpu.pipeline_mode<synchronous>, transform_indices = @transform_14, window_bounds = array<i64: 1, 64>}, {pipeline_mode = #tpu.pipeline_mode<synchronous>, transform_indices = @transform_15, window_bounds = array<i64: 64, 64>}, {pipeline_mode = #tpu.pipeline_mode<synchronous>, transform_indices = @transform_16, window_bounds = array<i64: 1, 64>}, {pipeline_mode = #tpu.pipeline_mode<synchronous>, transform_indices = @transform_17, window_bounds = array<i64: 64, 32>}, {pipeline_mode = #tpu.pipeline_mode<synchronous>, transform_indices = @transform_18, window_bounds = array<i64: 1, 32>}, {pipeline_mode = #tpu.pipeline_mode<synchronous>, transform_indices = @transform_19, window_bounds = array<i64: 32, 128>}, {pipeline_mode = #tpu.pipeline_mode<synchronous>, transform_indices = @transform_20, window_bounds = array<i64: 1, 128>}, {pipeline_mode = #tpu.pipeline_mode<synchronous>, transform_indices = @transform_21, window_bounds = array<i64: 32, 64>}, {pipeline_mode = #tpu.pipeline_mode<synchronous>, transform_indices = @transform_22, window_bounds = array<i64: 128, 64>}, {pipeline_mode = #tpu.pipeline_mode<synchronous>, transform_indices = @transform_23, window_bounds = array<i64: 128, 64>}, {pipeline_mode = #tpu.pipeline_mode<synchronous>, transform_indices = @transform_24, window_bounds = array<i64: 1, 64>}, {pipeline_mode = #tpu.pipeline_mode<synchronous>, transform_indices = @transform_25, window_bounds = array<i64: 64, 64>}, {pipeline_mode = #tpu.pipeline_mode<synchronous>, transform_indices = @transform_26, window_bounds = array<i64: 1, 64>}, {pipeline_mode = #tpu.pipeline_mode<synchronous>, transform_indices = @transform_27, window_bounds = array<i64: 64, 32>}, {pipeline_mode = #tpu.pipeline_mode<synchronous>, transform_indices = @transform_28, window_bounds = array<i64: 1, 32>}, {pipeline_mode = #tpu.pipeline_mode<synchronous>, transform_indices = @transform_29, window_bounds = array<i64: 32, 128>}, {pipeline_mode = #tpu.pipeline_mode<synchronous>, transform_indices = @transform_30, window_bounds = array<i64: 1, 128>}, {transform_indices = @transform_31, window_bounds = array<i64: 2, 128>}]} {
    %c0 = arith.constant 0 : index
    %c0_0 = arith.constant 0 : index
    %0 = vector.load %arg1[%c0, %c0_0] : memref<2x32xf32, #tpu.memory_space<vmem>>, vector<2x32xf32>
    %c0_1 = arith.constant 0 : index
    %c0_2 = arith.constant 0 : index
    %1 = vector.load %arg2[%c0_1, %c0_2] : memref<2x16xf32, #tpu.memory_space<vmem>>, vector<2x16xf32>
    %c0_3 = arith.constant 0 : index
    %c0_4 = arith.constant 0 : index
    %2 = vector.load %arg3[%c0_3, %c0_4] : memref<2x12xf32, #tpu.memory_space<vmem>>, vector<2x12xf32>
    %c0_5 = arith.constant 0 : index
    %c0_6 = arith.constant 0 : index
    %3 = vector.load %arg4[%c0_5, %c0_6] : memref<16x32xf32, #tpu.memory_space<vmem>>, vector<16x32xf32>
    %c0_7 = arith.constant 0 : index
    %c0_8 = arith.constant 0 : index
    %4 = vector.load %arg5[%c0_7, %c0_8] : memref<1x32xf32, #tpu.memory_space<vmem>>, vector<1x32xf32>
    %cst = arith.constant dense<0.000000e+00> : vector<2x32xf32>
    %5 = tpu.matmul %1, %3, %cst {dimension_numbers = #tpu.dot_dimension_numbers<[1], [0], [0], [1], [0, 0, 1, 1], [], []>} : vector<2x16xf32>, vector<16x32xf32>, vector<2x32xf32> -> vector<2x32xf32>
    %6 = vector.broadcast %4 : vector<1x32xf32> to vector<2x32xf32>
    %7 = arith.addf %5, %6 : vector<2x32xf32>
    %8 = math.tanh %7 : vector<2x32xf32>
    %c0_9 = arith.constant 0 : index
    %c0_10 = arith.constant 0 : index
    %9 = vector.load %arg6[%c0_9, %c0_10] : memref<32x128xf32, #tpu.memory_space<vmem>>, vector<32x128xf32>
    %c0_11 = arith.constant 0 : index
    %c0_12 = arith.constant 0 : index
    %10 = vector.load %arg7[%c0_11, %c0_12] : memref<1x128xf32, #tpu.memory_space<vmem>>, vector<1x128xf32>
    %cst_13 = arith.constant dense<0.000000e+00> : vector<2x128xf32>
    %11 = tpu.matmul %8, %9, %cst_13 {dimension_numbers = #tpu.dot_dimension_numbers<[1], [0], [0], [1], [0, 0, 1, 1], [], []>} : vector<2x32xf32>, vector<32x128xf32>, vector<2x128xf32> -> vector<2x128xf32>
    %12 = vector.broadcast %10 : vector<1x128xf32> to vector<2x128xf32>
    %13 = arith.addf %11, %12 : vector<2x128xf32>
    %14 = math.tanh %13 : vector<2x128xf32>
    %c0_14 = arith.constant 0 : index
    %c0_15 = arith.constant 0 : index
    %15 = vector.load %arg8[%c0_14, %c0_15] : memref<12x32xf32, #tpu.memory_space<vmem>>, vector<12x32xf32>
    %c0_16 = arith.constant 0 : index
    %c0_17 = arith.constant 0 : index
    %16 = vector.load %arg9[%c0_16, %c0_17] : memref<1x32xf32, #tpu.memory_space<vmem>>, vector<1x32xf32>
    %cst_18 = arith.constant dense<0.000000e+00> : vector<2x32xf32>
    %17 = tpu.matmul %2, %15, %cst_18 {dimension_numbers = #tpu.dot_dimension_numbers<[1], [0], [0], [1], [0, 0, 1, 1], [], []>} : vector<2x12xf32>, vector<12x32xf32>, vector<2x32xf32> -> vector<2x32xf32>
    %18 = vector.broadcast %16 : vector<1x32xf32> to vector<2x32xf32>
    %19 = arith.addf %17, %18 : vector<2x32xf32>
    %cst_19 = arith.constant 0.000000e+00 : f32
    %20 = vector.broadcast %cst_19 : f32 to vector<2x32xf32>
    %21 = arith.maximumf %19, %20 : vector<2x32xf32>
    %c0_20 = arith.constant 0 : index
    %c0_21 = arith.constant 0 : index
    %22 = vector.load %arg10[%c0_20, %c0_21] : memref<32x128xf32, #tpu.memory_space<vmem>>, vector<32x128xf32>
    %c0_22 = arith.constant 0 : index
    %c0_23 = arith.constant 0 : index
    %23 = vector.load %arg11[%c0_22, %c0_23] : memref<1x128xf32, #tpu.memory_space<vmem>>, vector<1x128xf32>
    %cst_24 = arith.constant dense<0.000000e+00> : vector<2x128xf32>
    %24 = tpu.matmul %21, %22, %cst_24 {dimension_numbers = #tpu.dot_dimension_numbers<[1], [0], [0], [1], [0, 0, 1, 1], [], []>} : vector<2x32xf32>, vector<32x128xf32>, vector<2x128xf32> -> vector<2x128xf32>
    %25 = vector.broadcast %23 : vector<1x128xf32> to vector<2x128xf32>
    %26 = arith.addf %24, %25 : vector<2x128xf32>
    %27 = math.tanh %26 : vector<2x128xf32>
    %c0_25 = arith.constant 0 : index
    %c0_26 = arith.constant 0 : index
    %28 = vector.load %arg12[%c0_25, %c0_26] : memref<32x64xf32, #tpu.memory_space<vmem>>, vector<32x64xf32>
    %cst_27 = arith.constant dense<0.000000e+00> : vector<2x64xf32>
    %29 = tpu.matmul %0, %28, %cst_27 {dimension_numbers = #tpu.dot_dimension_numbers<[1], [0], [0], [1], [0, 0, 1, 1], [], []>} : vector<2x32xf32>, vector<32x64xf32>, vector<2x64xf32> -> vector<2x64xf32>
    %c0_28 = arith.constant 0 : index
    %c0_29 = arith.constant 0 : index
    %30 = vector.load %arg13[%c0_28, %c0_29] : memref<128x64xf32, #tpu.memory_space<vmem>>, vector<128x64xf32>
    %cst_30 = arith.constant dense<0.000000e+00> : vector<2x64xf32>
    %31 = tpu.matmul %14, %30, %cst_30 {dimension_numbers = #tpu.dot_dimension_numbers<[1], [0], [0], [1], [0, 0, 1, 1], [], []>} : vector<2x128xf32>, vector<128x64xf32>, vector<2x64xf32> -> vector<2x64xf32>
    %32 = arith.addf %29, %31 : vector<2x64xf32>
    %c0_31 = arith.constant 0 : index
    %c0_32 = arith.constant 0 : index
    %33 = vector.load %arg14[%c0_31, %c0_32] : memref<128x64xf32, #tpu.memory_space<vmem>>, vector<128x64xf32>
    %cst_33 = arith.constant dense<0.000000e+00> : vector<2x64xf32>
    %34 = tpu.matmul %27, %33, %cst_33 {dimension_numbers = #tpu.dot_dimension_numbers<[1], [0], [0], [1], [0, 0, 1, 1], [], []>} : vector<2x128xf32>, vector<128x64xf32>, vector<2x64xf32> -> vector<2x64xf32>
    %35 = arith.addf %32, %34 : vector<2x64xf32>
    %c0_34 = arith.constant 0 : index
    %c0_35 = arith.constant 0 : index
    %36 = vector.load %arg15[%c0_34, %c0_35] : memref<1x64xf32, #tpu.memory_space<vmem>>, vector<1x64xf32>
    %37 = vector.broadcast %36 : vector<1x64xf32> to vector<2x64xf32>
    %38 = arith.addf %35, %37 : vector<2x64xf32>
    %39 = math.tanh %38 : vector<2x64xf32>
    %c0_36 = arith.constant 0 : index
    %c0_37 = arith.constant 0 : index
    %40 = vector.load %arg16[%c0_36, %c0_37] : memref<64x64xf32, #tpu.memory_space<vmem>>, vector<64x64xf32>
    %c0_38 = arith.constant 0 : index
    %c0_39 = arith.constant 0 : index
    %41 = vector.load %arg17[%c0_38, %c0_39] : memref<1x64xf32, #tpu.memory_space<vmem>>, vector<1x64xf32>
    %cst_40 = arith.constant dense<0.000000e+00> : vector<2x64xf32>
    %42 = tpu.matmul %39, %40, %cst_40 {dimension_numbers = #tpu.dot_dimension_numbers<[1], [0], [0], [1], [0, 0, 1, 1], [], []>} : vector<2x64xf32>, vector<64x64xf32>, vector<2x64xf32> -> vector<2x64xf32>
    %43 = vector.broadcast %41 : vector<1x64xf32> to vector<2x64xf32>
    %44 = arith.addf %42, %43 : vector<2x64xf32>
    %45 = math.tanh %44 : vector<2x64xf32>
    %c0_41 = arith.constant 0 : index
    %c0_42 = arith.constant 0 : index
    %46 = vector.load %arg18[%c0_41, %c0_42] : memref<64x32xf32, #tpu.memory_space<vmem>>, vector<64x32xf32>
    %c0_43 = arith.constant 0 : index
    %c0_44 = arith.constant 0 : index
    %47 = vector.load %arg19[%c0_43, %c0_44] : memref<1x32xf32, #tpu.memory_space<vmem>>, vector<1x32xf32>
    %cst_45 = arith.constant dense<0.000000e+00> : vector<2x32xf32>
    %48 = tpu.matmul %45, %46, %cst_45 {dimension_numbers = #tpu.dot_dimension_numbers<[1], [0], [0], [1], [0, 0, 1, 1], [], []>} : vector<2x64xf32>, vector<64x32xf32>, vector<2x32xf32> -> vector<2x32xf32>
    %49 = vector.broadcast %47 : vector<1x32xf32> to vector<2x32xf32>
    %50 = arith.addf %48, %49 : vector<2x32xf32>
    %51 = math.tanh %50 : vector<2x32xf32>
    %c0_46 = arith.constant 0 : index
    %c0_47 = arith.constant 0 : index
    %52 = vector.load %arg20[%c0_46, %c0_47] : memref<32x128xf32, #tpu.memory_space<vmem>>, vector<32x128xf32>
    %c0_48 = arith.constant 0 : index
    %c0_49 = arith.constant 0 : index
    %53 = vector.load %arg21[%c0_48, %c0_49] : memref<1x128xf32, #tpu.memory_space<vmem>>, vector<1x128xf32>
    %cst_50 = arith.constant dense<0.000000e+00> : vector<2x128xf32>
    %54 = tpu.matmul %51, %52, %cst_50 {dimension_numbers = #tpu.dot_dimension_numbers<[1], [0], [0], [1], [0, 0, 1, 1], [], []>} : vector<2x32xf32>, vector<32x128xf32>, vector<2x128xf32> -> vector<2x128xf32>
    %55 = vector.broadcast %53 : vector<1x128xf32> to vector<2x128xf32>
    %56 = arith.addf %54, %55 : vector<2x128xf32>
    %c0_51 = arith.constant 0 : index
    %c0_52 = arith.constant 0 : index
    %57 = vector.load %arg22[%c0_51, %c0_52] : memref<32x64xf32, #tpu.memory_space<vmem>>, vector<32x64xf32>
    %cst_53 = arith.constant dense<0.000000e+00> : vector<2x64xf32>
    %58 = tpu.matmul %0, %57, %cst_53 {dimension_numbers = #tpu.dot_dimension_numbers<[1], [0], [0], [1], [0, 0, 1, 1], [], []>} : vector<2x32xf32>, vector<32x64xf32>, vector<2x64xf32> -> vector<2x64xf32>
    %c0_54 = arith.constant 0 : index
    %c0_55 = arith.constant 0 : index
    %59 = vector.load %arg23[%c0_54, %c0_55] : memref<128x64xf32, #tpu.memory_space<vmem>>, vector<128x64xf32>
    %cst_56 = arith.constant dense<0.000000e+00> : vector<2x64xf32>
    %60 = tpu.matmul %14, %59, %cst_56 {dimension_numbers = #tpu.dot_dimension_numbers<[1], [0], [0], [1], [0, 0, 1, 1], [], []>} : vector<2x128xf32>, vector<128x64xf32>, vector<2x64xf32> -> vector<2x64xf32>
    %61 = arith.addf %58, %60 : vector<2x64xf32>
    %c0_57 = arith.constant 0 : index
    %c0_58 = arith.constant 0 : index
    %62 = vector.load %arg24[%c0_57, %c0_58] : memref<128x64xf32, #tpu.memory_space<vmem>>, vector<128x64xf32>
    %cst_59 = arith.constant dense<0.000000e+00> : vector<2x64xf32>
    %63 = tpu.matmul %27, %62, %cst_59 {dimension_numbers = #tpu.dot_dimension_numbers<[1], [0], [0], [1], [0, 0, 1, 1], [], []>} : vector<2x128xf32>, vector<128x64xf32>, vector<2x64xf32> -> vector<2x64xf32>
    %64 = arith.addf %61, %63 : vector<2x64xf32>
    %c0_60 = arith.constant 0 : index
    %c0_61 = arith.constant 0 : index
    %65 = vector.load %arg25[%c0_60, %c0_61] : memref<1x64xf32, #tpu.memory_space<vmem>>, vector<1x64xf32>
    %66 = vector.broadcast %65 : vector<1x64xf32> to vector<2x64xf32>
    %67 = arith.addf %64, %66 : vector<2x64xf32>
    %68 = math.tanh %67 : vector<2x64xf32>
    %c0_62 = arith.constant 0 : index
    %c0_63 = arith.constant 0 : index
    %69 = vector.load %arg26[%c0_62, %c0_63] : memref<64x64xf32, #tpu.memory_space<vmem>>, vector<64x64xf32>
    %c0_64 = arith.constant 0 : index
    %c0_65 = arith.constant 0 : index
    %70 = vector.load %arg27[%c0_64, %c0_65] : memref<1x64xf32, #tpu.memory_space<vmem>>, vector<1x64xf32>
    %cst_66 = arith.constant dense<0.000000e+00> : vector<2x64xf32>
    %71 = tpu.matmul %68, %69, %cst_66 {dimension_numbers = #tpu.dot_dimension_numbers<[1], [0], [0], [1], [0, 0, 1, 1], [], []>} : vector<2x64xf32>, vector<64x64xf32>, vector<2x64xf32> -> vector<2x64xf32>
    %72 = vector.broadcast %70 : vector<1x64xf32> to vector<2x64xf32>
    %73 = arith.addf %71, %72 : vector<2x64xf32>
    %74 = math.tanh %73 : vector<2x64xf32>
    %c0_67 = arith.constant 0 : index
    %c0_68 = arith.constant 0 : index
    %75 = vector.load %arg28[%c0_67, %c0_68] : memref<64x32xf32, #tpu.memory_space<vmem>>, vector<64x32xf32>
    %c0_69 = arith.constant 0 : index
    %c0_70 = arith.constant 0 : index
    %76 = vector.load %arg29[%c0_69, %c0_70] : memref<1x32xf32, #tpu.memory_space<vmem>>, vector<1x32xf32>
    %cst_71 = arith.constant dense<0.000000e+00> : vector<2x32xf32>
    %77 = tpu.matmul %74, %75, %cst_71 {dimension_numbers = #tpu.dot_dimension_numbers<[1], [0], [0], [1], [0, 0, 1, 1], [], []>} : vector<2x64xf32>, vector<64x32xf32>, vector<2x32xf32> -> vector<2x32xf32>
    %78 = vector.broadcast %76 : vector<1x32xf32> to vector<2x32xf32>
    %79 = arith.addf %77, %78 : vector<2x32xf32>
    %80 = math.tanh %79 : vector<2x32xf32>
    %c0_72 = arith.constant 0 : index
    %c0_73 = arith.constant 0 : index
    %81 = vector.load %arg30[%c0_72, %c0_73] : memref<32x128xf32, #tpu.memory_space<vmem>>, vector<32x128xf32>
    %c0_74 = arith.constant 0 : index
    %c0_75 = arith.constant 0 : index
    %82 = vector.load %arg31[%c0_74, %c0_75] : memref<1x128xf32, #tpu.memory_space<vmem>>, vector<1x128xf32>
    %cst_76 = arith.constant dense<0.000000e+00> : vector<2x128xf32>
    %83 = tpu.matmul %80, %81, %cst_76 {dimension_numbers = #tpu.dot_dimension_numbers<[1], [0], [0], [1], [0, 0, 1, 1], [], []>} : vector<2x32xf32>, vector<32x128xf32>, vector<2x128xf32> -> vector<2x128xf32>
    %84 = arith.addf %56, %83 : vector<2x128xf32>
    %85 = vector.broadcast %82 : vector<1x128xf32> to vector<2x128xf32>
    %86 = arith.addf %84, %85 : vector<2x128xf32>
    %87 = arith.addf %86, %14 : vector<2x128xf32>
    %88 = arith.addf %87, %27 : vector<2x128xf32>
    %c0_77 = arith.constant 0 : index
    %c0_78 = arith.constant 0 : index
    %89 = vector.load %arg32[%c0_77, %c0_78] : memref<2x128xf32, #tpu.memory_space<vmem>>, vector<2x128xf32>
    tpu.vector_store %arg32[%c0_77, %c0_78], %88 {strides = array<i32>} : memref<2x128xf32, #tpu.memory_space<vmem>>, vector<2x128xf32>,
    return
  }
  func.func @transform_0(%arg0: i32) -> (i32, i32) {
    %c0_i32 = arith.constant 0 : i32
    %c0_i32_0 = arith.constant 0 : i32
    return %arg0, %c0_i32 : i32, i32
  }
  func.func @transform_1(%arg0: i32) -> (i32, i32) {
    %c0_i32 = arith.constant 0 : i32
    %c0_i32_0 = arith.constant 0 : i32
    return %arg0, %c0_i32 : i32, i32
  }
  func.func @transform_2(%arg0: i32) -> (i32, i32) {
    %c0_i32 = arith.constant 0 : i32
    %c0_i32_0 = arith.constant 0 : i32
    return %arg0, %c0_i32 : i32, i32
  }
  func.func @transform_3(%arg0: i32) -> (i32, i32) {
    %c0_i32 = arith.constant 0 : i32
    %c0_i32_0 = arith.constant 0 : i32
    %c0_i32_1 = arith.constant 0 : i32
    return %c0_i32, %c0_i32_0 : i32, i32
  }
  func.func @transform_4(%arg0: i32) -> (i32, i32) {
    %c0_i32 = arith.constant 0 : i32
    %c0_i32_0 = arith.constant 0 : i32
    %c0_i32_1 = arith.constant 0 : i32
    return %c0_i32, %c0_i32_0 : i32, i32
  }
  func.func @transform_5(%arg0: i32) -> (i32, i32) {
    %c0_i32 = arith.constant 0 : i32
    %c0_i32_0 = arith.constant 0 : i32
    %c0_i32_1 = arith.constant 0 : i32
    return %c0_i32, %c0_i32_0 : i32, i32
  }
  func.func @transform_6(%arg0: i32) -> (i32, i32) {
    %c0_i32 = arith.constant 0 : i32
    %c0_i32_0 = arith.constant 0 : i32
    %c0_i32_1 = arith.constant 0 : i32
    return %c0_i32, %c0_i32_0 : i32, i32
  }
  func.func @transform_7(%arg0: i32) -> (i32, i32) {
    %c0_i32 = arith.constant 0 : i32
    %c0_i32_0 = arith.constant 0 : i32
    %c0_i32_1 = arith.constant 0 : i32
    return %c0_i32, %c0_i32_0 : i32, i32
  }
  func.func @transform_8(%arg0: i32) -> (i32, i32) {
    %c0_i32 = arith.constant 0 : i32
    %c0_i32_0 = arith.constant 0 : i32
    %c0_i32_1 = arith.constant 0 : i32
    return %c0_i32, %c0_i32_0 : i32, i32
  }
  func.func @transform_9(%arg0: i32) -> (i32, i32) {
    %c0_i32 = arith.constant 0 : i32
    %c0_i32_0 = arith.constant 0 : i32
    %c0_i32_1 = arith.constant 0 : i32
    return %c0_i32, %c0_i32_0 : i32, i32
  }
  func.func @transform_10(%arg0: i32) -> (i32, i32) {
    %c0_i32 = arith.constant 0 : i32
    %c0_i32_0 = arith.constant 0 : i32
    %c0_i32_1 = arith.constant 0 : i32
    return %c0_i32, %c0_i32_0 : i32, i32
  }
  func.func @transform_11(%arg0: i32) -> (i32, i32) {
    %c0_i32 = arith.constant 0 : i32
    %c0_i32_0 = arith.constant 0 : i32
    %c0_i32_1 = arith.constant 0 : i32
    return %c0_i32, %c0_i32_0 : i32, i32
  }
  func.func @transform_12(%arg0: i32) -> (i32, i32) {
    %c0_i32 = arith.constant 0 : i32
    %c0_i32_0 = arith.constant 0 : i32
    %c0_i32_1 = arith.constant 0 : i32
    return %c0_i32, %c0_i32_0 : i32, i32
  }
  func.func @transform_13(%arg0: i32) -> (i32, i32) {
    %c0_i32 = arith.constant 0 : i32
    %c0_i32_0 = arith.constant 0 : i32
    %c0_i32_1 = arith.constant 0 : i32
    return %c0_i32, %c0_i32_0 : i32, i32
  }
  func.func @transform_14(%arg0: i32) -> (i32, i32) {
    %c0_i32 = arith.constant 0 : i32
    %c0_i32_0 = arith.constant 0 : i32
    %c0_i32_1 = arith.constant 0 : i32
    return %c0_i32, %c0_i32_0 : i32, i32
  }
  func.func @transform_15(%arg0: i32) -> (i32, i32) {
    %c0_i32 = arith.constant 0 : i32
    %c0_i32_0 = arith.constant 0 : i32
    %c0_i32_1 = arith.constant 0 : i32
    return %c0_i32, %c0_i32_0 : i32, i32
  }
  func.func @transform_16(%arg0: i32) -> (i32, i32) {
    %c0_i32 = arith.constant 0 : i32
    %c0_i32_0 = arith.constant 0 : i32
    %c0_i32_1 = arith.constant 0 : i32
    return %c0_i32, %c0_i32_0 : i32, i32
  }
  func.func @transform_17(%arg0: i32) -> (i32, i32) {
    %c0_i32 = arith.constant 0 : i32
    %c0_i32_0 = arith.constant 0 : i32
    %c0_i32_1 = arith.constant 0 : i32
    return %c0_i32, %c0_i32_0 : i32, i32
  }
  func.func @transform_18(%arg0: i32) -> (i32, i32) {
    %c0_i32 = arith.constant 0 : i32
    %c0_i32_0 = arith.constant 0 : i32
    %c0_i32_1 = arith.constant 0 : i32
    return %c0_i32, %c0_i32_0 : i32, i32
  }
  func.func @transform_19(%arg0: i32) -> (i32, i32) {
    %c0_i32 = arith.constant 0 : i32
    %c0_i32_0 = arith.constant 0 : i32
    %c0_i32_1 = arith.constant 0 : i32
    return %c0_i32, %c0_i32_0 : i32, i32
  }
  func.func @transform_20(%arg0: i32) -> (i32, i32) {
    %c0_i32 = arith.constant 0 : i32
    %c0_i32_0 = arith.constant 0 : i32
    %c0_i32_1 = arith.constant 0 : i32
    return %c0_i32, %c0_i32_0 : i32, i32
  }
  func.func @transform_21(%arg0: i32) -> (i32, i32) {
    %c0_i32 = arith.constant 0 : i32
    %c0_i32_0 = arith.constant 0 : i32
    %c0_i32_1 = arith.constant 0 : i32
    return %c0_i32, %c0_i32_0 : i32, i32
  }
  func.func @transform_22(%arg0: i32) -> (i32, i32) {
    %c0_i32 = arith.constant 0 : i32
    %c0_i32_0 = arith.constant 0 : i32
    %c0_i32_1 = arith.constant 0 : i32
    return %c0_i32, %c0_i32_0 : i32, i32
  }
  func.func @transform_23(%arg0: i32) -> (i32, i32) {
    %c0_i32 = arith.constant 0 : i32
    %c0_i32_0 = arith.constant 0 : i32
    %c0_i32_1 = arith.constant 0 : i32
    return %c0_i32, %c0_i32_0 : i32, i32
  }
  func.func @transform_24(%arg0: i32) -> (i32, i32) {
    %c0_i32 = arith.constant 0 : i32
    %c0_i32_0 = arith.constant 0 : i32
    %c0_i32_1 = arith.constant 0 : i32
    return %c0_i32, %c0_i32_0 : i32, i32
  }
  func.func @transform_25(%arg0: i32) -> (i32, i32) {
    %c0_i32 = arith.constant 0 : i32
    %c0_i32_0 = arith.constant 0 : i32
    %c0_i32_1 = arith.constant 0 : i32
    return %c0_i32, %c0_i32_0 : i32, i32
  }
  func.func @transform_26(%arg0: i32) -> (i32, i32) {
    %c0_i32 = arith.constant 0 : i32
    %c0_i32_0 = arith.constant 0 : i32
    %c0_i32_1 = arith.constant 0 : i32
    return %c0_i32, %c0_i32_0 : i32, i32
  }
  func.func @transform_27(%arg0: i32) -> (i32, i32) {
    %c0_i32 = arith.constant 0 : i32
    %c0_i32_0 = arith.constant 0 : i32
    %c0_i32_1 = arith.constant 0 : i32
    return %c0_i32, %c0_i32_0 : i32, i32
  }
  func.func @transform_28(%arg0: i32) -> (i32, i32) {
    %c0_i32 = arith.constant 0 : i32
    %c0_i32_0 = arith.constant 0 : i32
    %c0_i32_1 = arith.constant 0 : i32
    return %c0_i32, %c0_i32_0 : i32, i32
  }
  func.func @transform_29(%arg0: i32) -> (i32, i32) {
    %c0_i32 = arith.constant 0 : i32
    %c0_i32_0 = arith.constant 0 : i32
    %c0_i32_1 = arith.constant 0 : i32
    return %c0_i32, %c0_i32_0 : i32, i32
  }
  func.func @transform_30(%arg0: i32) -> (i32, i32) {
    %c0_i32 = arith.constant 0 : i32
    %c0_i32_0 = arith.constant 0 : i32
    %c0_i32_1 = arith.constant 0 : i32
    return %c0_i32, %c0_i32_0 : i32, i32
  }
  func.func @transform_31(%arg0: i32) -> (i32, i32) {
    %c0_i32 = arith.constant 0 : i32
    %c0_i32_0 = arith.constant 0 : i32
    return %arg0, %c0_i32 : i32, i32
  }
}

</mosaic_0001>

<llo_original>
// kernel: tpu_custom_call.1
$region0: #{tpu_custom_call.1}
  #allocation0 [shape = 'u32[]', space=smem, size = 0x4, offset = 0x4, fixed_abs, tag = 'smem constant byte address 0x4 - core index']
  #allocation1 [shape = 'u32[72,128]{1,0:T(1,128)}', space=vmem, size = 0x9000, scoped, tag = 'internal scratch']
  %s0 = inlined_call_operand.smem [shape: u32[32], index: -1, kind: input, shape index: {}]
  %s1 = sld [smem:[%s0]]
  %s2 = scalar_lea.smem %s0, 1
  %s3 = sld [smem:[%s2]]
  %s4 = scalar_lea.smem %s0, 2
  %s5 = sld [smem:[%s4]]
  %s6 = scalar_lea.smem %s0, 3
  %s7 = sld [smem:[%s6]]
  %s8 = scalar_lea.smem %s0, 4
  %s9 = sld [smem:[%s8]]
  %s10 = scalar_lea.smem %s0, 5
  %s11 = sld [smem:[%s10]]
  %s12 = scalar_lea.smem %s0, 6
  %s13 = sld [smem:[%s12]]
  %s14 = scalar_lea.smem %s0, 7
  %s15 = sld [smem:[%s14]]
  %s16 = scalar_lea.smem %s0, 8
  %s17 = sld [smem:[%s16]]
  %s18 = scalar_lea.smem %s0, 9
  %s19 = sld [smem:[%s18]]
  %s20 = scalar_lea.smem %s0, 10
  %s21 = sld [smem:[%s20]]
  %s22 = scalar_lea.smem %s0, 11
  %s23 = sld [smem:[%s22]]
  %s24 = scalar_lea.smem %s0, 12
  %s25 = sld [smem:[%s24]]
  %s26 = scalar_lea.smem %s0, 13
  %s27 = sld [smem:[%s26]]
  %s28 = scalar_lea.smem %s0, 14
  %s29 = sld [smem:[%s28]]
  %s30 = scalar_lea.smem %s0, 15
  %s31 = sld [smem:[%s30]]
  %s32 = scalar_lea.smem %s0, 16
  %s33 = sld [smem:[%s32]]
  %s34 = scalar_lea.smem %s0, 17
  %s35 = sld [smem:[%s34]]
  %s36 = scalar_lea.smem %s0, 18
  %s37 = sld [smem:[%s36]]
  %s38 = scalar_lea.smem %s0, 19
  %s39 = sld [smem:[%s38]]
  %s40 = scalar_lea.smem %s0, 20
  %s41 = sld [smem:[%s40]]
  %s42 = scalar_lea.smem %s0, 21
  %s43 = sld [smem:[%s42]]
  %s44 = scalar_lea.smem %s0, 22
  %s45 = sld [smem:[%s44]]
  %s46 = scalar_lea.smem %s0, 23
  %s47 = sld [smem:[%s46]]
  %s48 = scalar_lea.smem %s0, 24
  %s49 = sld [smem:[%s48]]
  %s50 = scalar_lea.smem %s0, 25
  %s51 = sld [smem:[%s50]]
  %s52 = scalar_lea.smem %s0, 26
  %s53 = sld [smem:[%s52]]
  %s54 = scalar_lea.smem %s0, 27
  %s55 = sld [smem:[%s54]]
  %s56 = scalar_lea.smem %s0, 28
  %s57 = sld [smem:[%s56]]
  %s58 = scalar_lea.smem %s0, 29
  %s59 = sld [smem:[%s58]]
  %s60 = scalar_lea.smem %s0, 30
  %s61 = sld [smem:[%s60]]
  %s62 = scalar_lea.smem %s0, 31
  %s63 = sld [smem:[%s62]]
  %s64 = sld [smem:[#allocation0]]
  $region134: #{tpu_custom_call.1} parent=0
    _
  %s66 = ssub.s32 1, %s64
  %s67 = scalar_select 0, %s66, %s64
  $region1: #{tpu_custom_call.1} parent=0
    #allocation2 [shape = 'u8[1024]{0}', space=vmem, size = 0x400, scoped, tag = 'output window, operand 0, single buffered']
    #allocation3 [shape = 's32[1]{0}', space=sflag, size = 0x4, scoped, tag = 'scoped memory for tpu_custom_call.1']
    %68 = vsyncpa [#allocation3], 0
    // Predicated region
    $region2: #{tpu_custom_call.1} parent=1 // pred_check
      _
    $region3: #{tpu_custom_call.1} parent=1 // pred_check_branch
      %70 = sbr.rel (0) target = $region5
    $region4: #{tpu_custom_call.1} parent=1 // pred_region
      _
    $region5: #{tpu_custom_call.1} parent=1 // pred_fallthru
      _
    // Predicated region
    $region6: #{tpu_custom_call.1} parent=1 // pred_check
      _
    $region7: #{tpu_custom_call.1} parent=1 // pred_check_branch
      %72 = sbr.rel (0) target = $region9
    $region8: #{tpu_custom_call.1} parent=1 // pred_region
      _
    $region9: #{tpu_custom_call.1} parent=1 // pred_fallthru
      _
    // Predicated region
    $region10: #{tpu_custom_call.1} parent=1 // pred_check
      _
    $region11: #{tpu_custom_call.1} parent=1 // pred_check_branch
      %74 = sbr.rel (0) target = $region13
    $region12: #{tpu_custom_call.1} parent=1 // pred_region
      _
    $region13: #{tpu_custom_call.1} parent=1 // pred_fallthru
      _
    // Predicated region
    $region14: #{tpu_custom_call.1} parent=1 // pred_check
      _
    $region15: #{tpu_custom_call.1} parent=1 // pred_check_branch
      %76 = sbr.rel (0) target = $region17
    $region16: #{tpu_custom_call.1} parent=1 // pred_region
      _
    $region17: #{tpu_custom_call.1} parent=1 // pred_fallthru
      _
    // Predicated region
    $region18: #{tpu_custom_call.1} parent=1 // pred_check
      _
    $region19: #{tpu_custom_call.1} parent=1 // pred_check_branch
      %78 = sbr.rel (0) target = $region21
    $region20: #{tpu_custom_call.1} parent=1 // pred_region
      _
    $region21: #{tpu_custom_call.1} parent=1 // pred_fallthru
      _
    // Predicated region
    $region22: #{tpu_custom_call.1} parent=1 // pred_check
      _
    $region23: #{tpu_custom_call.1} parent=1 // pred_check_branch
      %80 = sbr.rel (0) target = $region25
    $region24: #{tpu_custom_call.1} parent=1 // pred_region
      _
    $region25: #{tpu_custom_call.1} parent=1 // pred_fallthru
      _
    // Predicated region
    $region26: #{tpu_custom_call.1} parent=1 // pred_check
      _
    $region27: #{tpu_custom_call.1} parent=1 // pred_check_branch
      %82 = sbr.rel (0) target = $region29
    $region28: #{tpu_custom_call.1} parent=1 // pred_region
      _
    $region29: #{tpu_custom_call.1} parent=1 // pred_fallthru
      _
    // Predicated region
    $region30: #{tpu_custom_call.1} parent=1 // pred_check
      _
    $region31: #{tpu_custom_call.1} parent=1 // pred_check_branch
      %84 = sbr.rel (0) target = $region33
    $region32: #{tpu_custom_call.1} parent=1 // pred_region
      _
    $region33: #{tpu_custom_call.1} parent=1 // pred_fallthru
      _
    // Predicated region
    $region34: #{tpu_custom_call.1} parent=1 // pred_check
      _
    $region35: #{tpu_custom_call.1} parent=1 // pred_check_branch
      %86 = sbr.rel (0) target = $region37
    $region36: #{tpu_custom_call.1} parent=1 // pred_region
      _
    $region37: #{tpu_custom_call.1} parent=1 // pred_fallthru
      _
    // Predicated region
    $region38: #{tpu_custom_call.1} parent=1 // pred_check
      _
    $region39: #{tpu_custom_call.1} parent=1 // pred_check_branch
      %88 = sbr.rel (0) target = $region41
    $region40: #{tpu_custom_call.1} parent=1 // pred_region
      _
    $region41: #{tpu_custom_call.1} parent=1 // pred_fallthru
      _
    // Predicated region
    $region42: #{tpu_custom_call.1} parent=1 // pred_check
      _
    $region43: #{tpu_custom_call.1} parent=1 // pred_check_branch
      %90 = sbr.rel (0) target = $region45
    $region44: #{tpu_custom_call.1} parent=1 // pred_region
      _
    $region45: #{tpu_custom_call.1} parent=1 // pred_fallthru
      _
    // Predicated region
    $region46: #{tpu_custom_call.1} parent=1 // pred_check
      _
    $region47: #{tpu_custom_call.1} parent=1 // pred_check_branch
      %92 = sbr.rel (0) target = $region49
    $region48: #{tpu_custom_call.1} parent=1 // pred_region
      _
    $region49: #{tpu_custom_call.1} parent=1 // pred_fallthru
      _
    // Predicated region
    $region50: #{tpu_custom_call.1} parent=1 // pred_check
      _
    $region51: #{tpu_custom_call.1} parent=1 // pred_check_branch
      %94 = sbr.rel (0) target = $region53
    $region52: #{tpu_custom_call.1} parent=1 // pred_region
      _
    $region53: #{tpu_custom_call.1} parent=1 // pred_fallthru
      _
    // Predicated region
    $region54: #{tpu_custom_call.1} parent=1 // pred_check
      _
    $region55: #{tpu_custom_call.1} parent=1 // pred_check_branch
      %96 = sbr.rel (0) target = $region57
    $region56: #{tpu_custom_call.1} parent=1 // pred_region
      _
    $region57: #{tpu_custom_call.1} parent=1 // pred_fallthru
      _
    // Predicated region
    $region58: #{tpu_custom_call.1} parent=1 // pred_check
      _
    $region59: #{tpu_custom_call.1} parent=1 // pred_check_branch
      %98 = sbr.rel (0) target = $region61
    $region60: #{tpu_custom_call.1} parent=1 // pred_region
      _
    $region61: #{tpu_custom_call.1} parent=1 // pred_fallthru
      _
    // Predicated region
    $region62: #{tpu_custom_call.1} parent=1 // pred_check
      _
    $region63: #{tpu_custom_call.1} parent=1 // pred_check_branch
      %100 = sbr.rel (0) target = $region65
    $region64: #{tpu_custom_call.1} parent=1 // pred_region
      _
    $region65: #{tpu_custom_call.1} parent=1 // pred_fallthru
      _
    // Predicated region
    $region66: #{tpu_custom_call.1} parent=1 // pred_check
      _
    $region67: #{tpu_custom_call.1} parent=1 // pred_check_branch
      %102 = sbr.rel (0) target = $region69
    $region68: #{tpu_custom_call.1} parent=1 // pred_region
      _
    $region69: #{tpu_custom_call.1} parent=1 // pred_fallthru
      _
    // Predicated region
    $region70: #{tpu_custom_call.1} parent=1 // pred_check
      _
    $region71: #{tpu_custom_call.1} parent=1 // pred_check_branch
      %104 = sbr.rel (0) target = $region73
    $region72: #{tpu_custom_call.1} parent=1 // pred_region
      _
    $region73: #{tpu_custom_call.1} parent=1 // pred_fallthru
      _
    // Predicated region
    $region74: #{tpu_custom_call.1} parent=1 // pred_check
      _
    $region75: #{tpu_custom_call.1} parent=1 // pred_check_branch
      %106 = sbr.rel (0) target = $region77
    $region76: #{tpu_custom_call.1} parent=1 // pred_region
      _
    $region77: #{tpu_custom_call.1} parent=1 // pred_fallthru
      _
    // Predicated region
    $region78: #{tpu_custom_call.1} parent=1 // pred_check
      _
    $region79: #{tpu_custom_call.1} parent=1 // pred_check_branch
      %108 = sbr.rel (0) target = $region81
    $region80: #{tpu_custom_call.1} parent=1 // pred_region
      _
    $region81: #{tpu_custom_call.1} parent=1 // pred_fallthru
      _
    // Predicated region
    $region82: #{tpu_custom_call.1} parent=1 // pred_check
      _
    $region83: #{tpu_custom_call.1} parent=1 // pred_check_branch
      %110 = sbr.rel (0) target = $region85
    $region84: #{tpu_custom_call.1} parent=1 // pred_region
      _
    $region85: #{tpu_custom_call.1} parent=1 // pred_fallthru
      _
    // Predicated region
    $region86: #{tpu_custom_call.1} parent=1 // pred_check
      _
    $region87: #{tpu_custom_call.1} parent=1 // pred_check_branch
      %112 = sbr.rel (0) target = $region89
    $region88: #{tpu_custom_call.1} parent=1 // pred_region
      _
    $region89: #{tpu_custom_call.1} parent=1 // pred_fallthru
      _
    // Predicated region
    $region90: #{tpu_custom_call.1} parent=1 // pred_check
      _
    $region91: #{tpu_custom_call.1} parent=1 // pred_check_branch
      %114 = sbr.rel (0) target = $region93
    $region92: #{tpu_custom_call.1} parent=1 // pred_region
      _
    $region93: #{tpu_custom_call.1} parent=1 // pred_fallthru
      _
    // Predicated region
    $region94: #{tpu_custom_call.1} parent=1 // pred_check
      _
    $region95: #{tpu_custom_call.1} parent=1 // pred_check_branch
      %116 = sbr.rel (0) target = $region97
    $region96: #{tpu_custom_call.1} parent=1 // pred_region
      _
    $region97: #{tpu_custom_call.1} parent=1 // pred_fallthru
      _
    // Predicated region
    $region98: #{tpu_custom_call.1} parent=1 // pred_check
      _
    $region99: #{tpu_custom_call.1} parent=1 // pred_check_branch
      %118 = sbr.rel (0) target = $region101
    $region100: #{tpu_custom_call.1} parent=1 // pred_region
      _
    $region101: #{tpu_custom_call.1} parent=1 // pred_fallthru
      _
    // Predicated region
    $region102: #{tpu_custom_call.1} parent=1 // pred_check
      _
    $region103: #{tpu_custom_call.1} parent=1 // pred_check_branch
      %120 = sbr.rel (0) target = $region105
    $region104: #{tpu_custom_call.1} parent=1 // pred_region
      _
    $region105: #{tpu_custom_call.1} parent=1 // pred_fallthru
      _
    // Predicated region
    $region106: #{tpu_custom_call.1} parent=1 // pred_check
      _
    $region107: #{tpu_custom_call.1} parent=1 // pred_check_branch
      %122 = sbr.rel (0) target = $region109
    $region108: #{tpu_custom_call.1} parent=1 // pred_region
      _
    $region109: #{tpu_custom_call.1} parent=1 // pred_fallthru
      _
    // Predicated region
    $region110: #{tpu_custom_call.1} parent=1 // pred_check
      _
    $region111: #{tpu_custom_call.1} parent=1 // pred_check_branch
      %124 = sbr.rel (0) target = $region113
    $region112: #{tpu_custom_call.1} parent=1 // pred_region
      _
    $region113: #{tpu_custom_call.1} parent=1 // pred_fallthru
      _
    // Predicated region
    $region114: #{tpu_custom_call.1} parent=1 // pred_check
      _
    $region115: #{tpu_custom_call.1} parent=1 // pred_check_branch
      %126 = sbr.rel (0) target = $region117
    $region116: #{tpu_custom_call.1} parent=1 // pred_region
      _
    $region117: #{tpu_custom_call.1} parent=1 // pred_fallthru
      _
    // Predicated region
    $region118: #{tpu_custom_call.1} parent=1 // pred_check
      _
    $region119: #{tpu_custom_call.1} parent=1 // pred_check_branch
      %128 = sbr.rel (0) target = $region121
    $region120: #{tpu_custom_call.1} parent=1 // pred_region
      _
    $region121: #{tpu_custom_call.1} parent=1 // pred_fallthru
      _
    // Predicated region
    $region122: #{tpu_custom_call.1} parent=1 // pred_check
      _
    $region123: #{tpu_custom_call.1} parent=1 // pred_check_branch
      %130 = sbr.rel (0) target = $region125
    $region124: #{tpu_custom_call.1} parent=1 // pred_region
      _
    $region125: #{tpu_custom_call.1} parent=1 // pred_fallthru
      _
    %v131 = vld [vmem:[%s1] sm:$0x3]
    %v132 = vld [vmem:[%s3] sm:$0x3]
    %v133 = vld [vmem:[%s5] sm:$0x3]
    %v134 = vld [vmem:[%s7] sm:$0xff]
    %v135 = vld [vmem:[%s7 + $0x8] sm:$0xff]
    %v136 = vld [vmem:[%s9] sm:$0x1]
    %v138 = vperm.slane %v136, 0
    %vm140 = vcmask 130048
    %v142 = vsel %vm140, %v132, 0
    %144 = vmatpush.msra.mxu0 0.0
    %145 = vmatpush.msra.mxu0 0.0
    %146 = vmatpush.msra.mxu0 0.0
    %147 = vmatpush.msra.mxu0 0.0
    %148 = vmatpush.msra.mxu0 0.0
    %149 = vmatpush.msra.mxu0 0.0
    %150 = vmatpush.msra.mxu0 0.0
    %151 = vmatpush.msra.mxu0 0.0
    %152 = vmatpush.msra.mxu0 0.0
    %153 = vmatpush.msra.mxu0 0.0
    %154 = vmatpush.msra.mxu0 0.0
    %155 = vmatpush.msra.mxu0 0.0
    %156 = vmatpush.msra.mxu0 0.0
    %157 = vmatpush.msra.mxu0 0.0
    %158 = vmatpush.msra.mxu0 %v135
    %159 = vmatpush.msra.mxu0 %v134
    %160 = vmatmul.f32.gmra.mxu0 %v142
    %v161 = vpop.f32.mrf.mxu0
    %v162 = vadd.f32 %v138, %v161
    %163 = vdwg.mxu0
    %v164 = vtanh.pop %v162
    %v165 = vld [vmem:[%s11] sm:$0xff]
    %v166 = vld [vmem:[%s11 + $0x8] sm:$0xff]
    %v167 = vld [vmem:[%s11 + $0x10] sm:$0xff]
    %v168 = vld [vmem:[%s11 + $0x18] sm:$0xff]
    %v169 = vld [vmem:[%s13] sm:$0x1]
    %v171 = vperm.slane %v169, 0
    %vm173 = vcmask 261120
    %v175 = vsel %vm173, %v164, 0
    %177 = vmatpush.msra.mxu0 0.0
    %178 = vmatpush.msra.mxu0 0.0
    %179 = vmatpush.msra.mxu0 0.0
    %180 = vmatpush.msra.mxu0 0.0
    %181 = vmatpush.msra.mxu0 0.0
    %182 = vmatpush.msra.mxu0 0.0
    %183 = vmatpush.msra.mxu0 0.0
    %184 = vmatpush.msra.mxu0 0.0
    %185 = vmatpush.msra.mxu0 0.0
    %186 = vmatpush.msra.mxu0 0.0
    %187 = vmatpush.msra.mxu0 0.0
    %188 = vmatpush.msra.mxu0 0.0
    %189 = vmatpush.msra.mxu0 %v168
    %190 = vmatpush.msra.mxu0 %v167
    %191 = vmatpush.msra.mxu0 %v166
    %192 = vmatpush.msra.mxu0 %v165
    %193 = vmatmul.f32.gmra.mxu0 %v175
    %v194 = vpop.f32.mrf.mxu0
    %v195 = vadd.f32 %v171, %v194
    %196 = vdwg.mxu0
    %v197 = vtanh.pop %v195
    %v198 = vld [vmem:[%s15] sm:$0xff]
    %v199 = vld [vmem:[%s15 + $0x8] sm:$0xf]
    %v200 = vld [vmem:[%s17] sm:$0x1]
    %v202 = vperm.slane %v200, 0
    %vm204 = vcmask 97280
    %v206 = vsel %vm204, %v133, 0
    %vm208 = vcmask 1043456
    %v210 = vsel %vm208, %v199, 0
    %212 = vmatpush.msra.mxu0 0.0
    %213 = vmatpush.msra.mxu0 0.0
    %214 = vmatpush.msra.mxu0 0.0
    %215 = vmatpush.msra.mxu0 0.0
    %216 = vmatpush.msra.mxu0 0.0
    %217 = vmatpush.msra.mxu0 0.0
    %218 = vmatpush.msra.mxu0 0.0
    %219 = vmatpush.msra.mxu0 0.0
    %220 = vmatpush.msra.mxu0 0.0
    %221 = vmatpush.msra.mxu0 0.0
    %222 = vmatpush.msra.mxu0 0.0
    %223 = vmatpush.msra.mxu0 0.0
    %224 = vmatpush.msra.mxu0 0.0
    %225 = vmatpush.msra.mxu0 0.0
    %226 = vmatpush.msra.mxu0 %v210
    %227 = vmatpush.msra.mxu0 %v198
    %228 = vmatmul.f32.gmra.mxu0 %v206
    %v229 = vpop.f32.mrf.mxu0
    %v230 = vadd.f32 %v202, %v229
    %231 = vdwg.mxu0
    %v232 = vmax.f32 %v230, 0.0
    %v233 = vld [vmem:[%s19] sm:$0xff]
    %v234 = vld [vmem:[%s19 + $0x8] sm:$0xff]
    %v235 = vld [vmem:[%s19 + $0x10] sm:$0xff]
    %v236 = vld [vmem:[%s19 + $0x18] sm:$0xff]
    %v237 = vld [vmem:[%s21] sm:$0x1]
    %v239 = vperm.slane %v237, 0
    %v242 = vsel %vm173, %v232, 0
    %244 = vmatpush.msra.mxu0 0.0
    %245 = vmatpush.msra.mxu0 0.0
    %246 = vmatpush.msra.mxu0 0.0
    %247 = vmatpush.msra.mxu0 0.0
    %248 = vmatpush.msra.mxu0 0.0
    %249 = vmatpush.msra.mxu0 0.0
    %250 = vmatpush.msra.mxu0 0.0
    %251 = vmatpush.msra.mxu0 0.0
    %252 = vmatpush.msra.mxu0 0.0
    %253 = vmatpush.msra.mxu0 0.0
    %254 = vmatpush.msra.mxu0 0.0
    %255 = vmatpush.msra.mxu0 0.0
    %256 = vmatpush.msra.mxu0 %v236
    %257 = vmatpush.msra.mxu0 %v235
    %258 = vmatpush.msra.mxu0 %v234
    %259 = vmatpush.msra.mxu0 %v233
    %260 = vmatmul.f32.gmra.mxu0 %v242
    %v261 = vpop.f32.mrf.mxu0
    %v262 = vadd.f32 %v239, %v261
    %263 = vdwg.mxu0
    %v264 = vtanh.pop %v262
    %v265 = vld [vmem:[%s23] sm:$0xff]
    %v266 = vld [vmem:[%s23 + $0x8] sm:$0xff]
    %v267 = vld [vmem:[%s23 + $0x10] sm:$0xff]
    %v268 = vld [vmem:[%s23 + $0x18] sm:$0xff]
    %v269 = vld [vmem:[%s25] sm:$0xff]
    %v270 = vld [vmem:[%s25 + $0x8] sm:$0xff]
    %v271 = vld [vmem:[%s25 + $0x10] sm:$0xff]
    %v272 = vld [vmem:[%s25 + $0x18] sm:$0xff]
    %v273 = vld [vmem:[%s25 + $0x20] sm:$0xff]
    %v274 = vld [vmem:[%s25 + $0x28] sm:$0xff]
    %v275 = vld [vmem:[%s25 + $0x30] sm:$0xff]
    %v276 = vld [vmem:[%s25 + $0x38] sm:$0xff]
    %v277 = vld [vmem:[%s25 + $0x40] sm:$0xff]
    %v278 = vld [vmem:[%s25 + $0x48] sm:$0xff]
    %v279 = vld [vmem:[%s25 + $0x50] sm:$0xff]
    %v280 = vld [vmem:[%s25 + $0x58] sm:$0xff]
    %v281 = vld [vmem:[%s25 + $0x60] sm:$0xff]
    %v282 = vld [vmem:[%s25 + $0x68] sm:$0xff]
    %v283 = vld [vmem:[%s25 + $0x70] sm:$0xff]
    %v284 = vld [vmem:[%s25 + $0x78] sm:$0xff]
    %285 = vmatpush.msra.mxu0 %v284
    %286 = vmatpush.msra.mxu0 %v283
    %287 = vmatpush.msra.mxu0 %v282
    %288 = vmatpush.msra.mxu0 %v281
    %289 = vmatpush.msra.mxu0 %v280
    %290 = vmatpush.msra.mxu0 %v279
    %291 = vmatpush.msra.mxu0 %v278
    %292 = vmatpush.msra.mxu0 %v277
    %293 = vmatpush.msra.mxu0 %v276
    %294 = vmatpush.msra.mxu0 %v275
    %295 = vmatpush.msra.mxu0 %v274
    %296 = vmatpush.msra.mxu0 %v273
    %297 = vmatpush.msra.mxu0 %v272
    %298 = vmatpush.msra.mxu0 %v271
    %299 = vmatpush.msra.mxu0 %v270
    %300 = vmatpush.msra.mxu0 %v269
    %301 = vmatmul.f32.gmra.mxu0 %v197
    %v302 = vpop.f32.mrf.mxu0
    %v303 = vadd.f32 0.0, %v302
    %304 = vdwg.mxu0
    %v306 = vsel %vm173, %v131, 0
    %308 = vmatpush.msra.mxu0 0.0
    %309 = vmatpush.msra.mxu0 0.0
    %310 = vmatpush.msra.mxu0 0.0
    %311 = vmatpush.msra.mxu0 0.0
    %312 = vmatpush.msra.mxu0 0.0
    %313 = vmatpush.msra.mxu0 0.0
    %314 = vmatpush.msra.mxu0 0.0
    %315 = vmatpush.msra.mxu0 0.0
    %316 = vmatpush.msra.mxu0 0.0
    %317 = vmatpush.msra.mxu0 0.0
    %318 = vmatpush.msra.mxu0 0.0
    %319 = vmatpush.msra.mxu0 0.0
    %320 = vmatpush.msra.mxu0 %v268
    %321 = vmatpush.msra.mxu0 %v267
    %322 = vmatpush.msra.mxu0 %v266
    %323 = vmatpush.msra.mxu0 %v265
    %324 = vmatmul.f32.gmra.mxu0 %v306
    %v325 = vpop.f32.mrf.mxu0
    %v326 = vadd.f32 %v303, %v325
    %327 = vdwg.mxu0
    %v328 = vld [vmem:[%s27] sm:$0xff]
    %v329 = vld [vmem:[%s27 + $0x8] sm:$0xff]
    %v330 = vld [vmem:[%s27 + $0x10] sm:$0xff]
    %v331 = vld [vmem:[%s27 + $0x18] sm:$0xff]
    %v332 = vld [vmem:[%s27 + $0x20] sm:$0xff]
    %v333 = vld [vmem:[%s27 + $0x28] sm:$0xff]
    %v334 = vld [vmem:[%s27 + $0x30] sm:$0xff]
    %v335 = vld [vmem:[%s27 + $0x38] sm:$0xff]
    %v336 = vld [vmem:[%s27 + $0x40] sm:$0xff]
    %v337 = vld [vmem:[%s27 + $0x48] sm:$0xff]
    %v338 = vld [vmem:[%s27 + $0x50] sm:$0xff]
    %v339 = vld [vmem:[%s27 + $0x58] sm:$0xff]
    %v340 = vld [vmem:[%s27 + $0x60] sm:$0xff]
    %v341 = vld [vmem:[%s27 + $0x68] sm:$0xff]
    %v342 = vld [vmem:[%s27 + $0x70] sm:$0xff]
    %v343 = vld [vmem:[%s27 + $0x78] sm:$0xff]
    %344 = vmatpush.msra.mxu0 %v343
    %345 = vmatpush.msra.mxu0 %v342
    %346 = vmatpush.msra.mxu0 %v341
    %347 = vmatpush.msra.mxu0 %v340
    %348 = vmatpush.msra.mxu0 %v339
    %349 = vmatpush.msra.mxu0 %v338
    %350 = vmatpush.msra.mxu0 %v337
    %351 = vmatpush.msra.mxu0 %v336
    %352 = vmatpush.msra.mxu0 %v335
    %353 = vmatpush.msra.mxu0 %v334
    %354 = vmatpush.msra.mxu0 %v333
    %355 = vmatpush.msra.mxu0 %v332
    %356 = vmatpush.msra.mxu0 %v331
    %357 = vmatpush.msra.mxu0 %v330
    %358 = vmatpush.msra.mxu0 %v329
    %359 = vmatpush.msra.mxu0 %v328
    %360 = vmatmul.f32.gmra.mxu0 %v264
    %v361 = vpop.f32.mrf.mxu0
    %v362 = vadd.f32 0.0, %v361
    %363 = vdwg.mxu0
    %v364 = vadd.f32 %v326, %v362
    %v365 = vld [vmem:[%s29] sm:$0x1]
    %v367 = vperm.slane %v365, 0
    %v369 = vadd.f32 %v364, %v367
    %v370 = vtanh.pop %v369
    %v371 = vld [vmem:[%s31] sm:$0xff]
    %v372 = vld [vmem:[%s31 + $0x8] sm:$0xff]
    %v373 = vld [vmem:[%s31 + $0x10] sm:$0xff]
    %v374 = vld [vmem:[%s31 + $0x18] sm:$0xff]
    %v375 = vld [vmem:[%s31 + $0x20] sm:$0xff]
    %v376 = vld [vmem:[%s31 + $0x28] sm:$0xff]
    %v377 = vld [vmem:[%s31 + $0x30] sm:$0xff]
    %v378 = vld [vmem:[%s31 + $0x38] sm:$0xff]
    %v379 = vld [vmem:[%s33] sm:$0x1]
    %v381 = vperm.slane %v379, 0
    %vm383 = vcmask 523264
    %v385 = vsel %vm383, %v370, 0
    %387 = vmatpush.msra.mxu0 0.0
    %388 = vmatpush.msra.mxu0 0.0
    %389 = vmatpush.msra.mxu0 0.0
    %390 = vmatpush.msra.mxu0 0.0
    %391 = vmatpush.msra.mxu0 0.0
    %392 = vmatpush.msra.mxu0 0.0
    %393 = vmatpush.msra.mxu0 0.0
    %394 = vmatpush.msra.mxu0 0.0
    %395 = vmatpush.msra.mxu0 %v378
    %396 = vmatpush.msra.mxu0 %v377
    %397 = vmatpush.msra.mxu0 %v376
    %398 = vmatpush.msra.mxu0 %v375
    %399 = vmatpush.msra.mxu0 %v374
    %400 = vmatpush.msra.mxu0 %v373
    %401 = vmatpush.msra.mxu0 %v372
    %402 = vmatpush.msra.mxu0 %v371
    %403 = vmatmul.f32.gmra.mxu0 %v385
    %v404 = vpop.f32.mrf.mxu0
    %v405 = vadd.f32 %v381, %v404
    %406 = vdwg.mxu0
    %v407 = vtanh.pop %v405
    %v408 = vld [vmem:[%s35] sm:$0xff]
    %v409 = vld [vmem:[%s35 + $0x8] sm:$0xff]
    %v410 = vld [vmem:[%s35 + $0x10] sm:$0xff]
    %v411 = vld [vmem:[%s35 + $0x18] sm:$0xff]
    %v412 = vld [vmem:[%s35 + $0x20] sm:$0xff]
    %v413 = vld [vmem:[%s35 + $0x28] sm:$0xff]
    %v414 = vld [vmem:[%s35 + $0x30] sm:$0xff]
    %v415 = vld [vmem:[%s35 + $0x38] sm:$0xff]
    %v416 = vld [vmem:[%s37] sm:$0x1]
    %v418 = vperm.slane %v416, 0
    %v421 = vsel %vm383, %v407, 0
    %423 = vmatpush.msra.mxu0 0.0
    %424 = vmatpush.msra.mxu0 0.0
    %425 = vmatpush.msra.mxu0 0.0
    %426 = vmatpush.msra.mxu0 0.0
    %427 = vmatpush.msra.mxu0 0.0
    %428 = vmatpush.msra.mxu0 0.0
    %429 = vmatpush.msra.mxu0 0.0
    %430 = vmatpush.msra.mxu0 0.0
    %431 = vmatpush.msra.mxu0 %v415
    %432 = vmatpush.msra.mxu0 %v414
    %433 = vmatpush.msra.mxu0 %v413
    %434 = vmatpush.msra.mxu0 %v412
    %435 = vmatpush.msra.mxu0 %v411
    %436 = vmatpush.msra.mxu0 %v410
    %437 = vmatpush.msra.mxu0 %v409
    %438 = vmatpush.msra.mxu0 %v408
    %439 = vmatmul.f32.gmra.mxu0 %v421
    %v440 = vpop.f32.mrf.mxu0
    %v441 = vadd.f32 %v418, %v440
    %442 = vdwg.mxu0
    %v443 = vtanh.pop %v441
    %v444 = vld [vmem:[%s39] sm:$0xff]
    %v445 = vld [vmem:[%s39 + $0x8] sm:$0xff]
    %v446 = vld [vmem:[%s39 + $0x10] sm:$0xff]
    %v447 = vld [vmem:[%s39 + $0x18] sm:$0xff]
    %v448 = vld [vmem:[%s41] sm:$0x1]
    %v450 = vperm.slane %v448, 0
    %v453 = vsel %vm173, %v443, 0
    %455 = vmatpush.msra.mxu0 0.0
    %456 = vmatpush.msra.mxu0 0.0
    %457 = vmatpush.msra.mxu0 0.0
    %458 = vmatpush.msra.mxu0 0.0
    %459 = vmatpush.msra.mxu0 0.0
    %460 = vmatpush.msra.mxu0 0.0
    %461 = vmatpush.msra.mxu0 0.0
    %462 = vmatpush.msra.mxu0 0.0
    %463 = vmatpush.msra.mxu0 0.0
    %464 = vmatpush.msra.mxu0 0.0
    %465 = vmatpush.msra.mxu0 0.0
    %466 = vmatpush.msra.mxu0 0.0
    %467 = vmatpush.msra.mxu0 %v447
    %468 = vmatpush.msra.mxu0 %v446
    %469 = vmatpush.msra.mxu0 %v445
    %470 = vmatpush.msra.mxu0 %v444
    %471 = vmatmul.f32.gmra.mxu0 %v453
    %v472 = vpop.f32.mrf.mxu0
    %v473 = vadd.f32 %v450, %v472
    %474 = vdwg.mxu0
    %v475 = vld [vmem:[%s43] sm:$0xff]
    %v476 = vld [vmem:[%s43 + $0x8] sm:$0xff]
    %v477 = vld [vmem:[%s43 + $0x10] sm:$0xff]
    %v478 = vld [vmem:[%s43 + $0x18] sm:$0xff]
    %v479 = vld [vmem:[%s45] sm:$0xff]
    %v480 = vld [vmem:[%s45 + $0x8] sm:$0xff]
    %v481 = vld [vmem:[%s45 + $0x10] sm:$0xff]
    %v482 = vld [vmem:[%s45 + $0x18] sm:$0xff]
    %v483 = vld [vmem:[%s45 + $0x20] sm:$0xff]
    %v484 = vld [vmem:[%s45 + $0x28] sm:$0xff]
    %v485 = vld [vmem:[%s45 + $0x30] sm:$0xff]
    %v486 = vld [vmem:[%s45 + $0x38] sm:$0xff]
    %v487 = vld [vmem:[%s45 + $0x40] sm:$0xff]
    %v488 = vld [vmem:[%s45 + $0x48] sm:$0xff]
    %v489 = vld [vmem:[%s45 + $0x50] sm:$0xff]
    %v490 = vld [vmem:[%s45 + $0x58] sm:$0xff]
    %v491 = vld [vmem:[%s45 + $0x60] sm:$0xff]
    %v492 = vld [vmem:[%s45 + $0x68] sm:$0xff]
    %v493 = vld [vmem:[%s45 + $0x70] sm:$0xff]
    %v494 = vld [vmem:[%s45 + $0x78] sm:$0xff]
    %495 = vmatpush.msra.mxu0 %v494
    %496 = vmatpush.msra.mxu0 %v493
    %497 = vmatpush.msra.mxu0 %v492
    %498 = vmatpush.msra.mxu0 %v491
    %499 = vmatpush.msra.mxu0 %v490
    %500 = vmatpush.msra.mxu0 %v489
    %501 = vmatpush.msra.mxu0 %v488
    %502 = vmatpush.msra.mxu0 %v487
    %503 = vmatpush.msra.mxu0 %v486
    %504 = vmatpush.msra.mxu0 %v485
    %505 = vmatpush.msra.mxu0 %v484
    %506 = vmatpush.msra.mxu0 %v483
    %507 = vmatpush.msra.mxu0 %v482
    %508 = vmatpush.msra.mxu0 %v481
    %509 = vmatpush.msra.mxu0 %v480
    %510 = vmatpush.msra.mxu0 %v479
    %511 = vmatmul.f32.gmra.mxu0 %v197
    %v512 = vpop.f32.mrf.mxu0
    %v513 = vadd.f32 0.0, %v512
    %514 = vdwg.mxu0
    %515 = vmatpush.msra.mxu0 0.0
    %516 = vmatpush.msra.mxu0 0.0
    %517 = vmatpush.msra.mxu0 0.0
    %518 = vmatpush.msra.mxu0 0.0
    %519 = vmatpush.msra.mxu0 0.0
    %520 = vmatpush.msra.mxu0 0.0
    %521 = vmatpush.msra.mxu0 0.0
    %522 = vmatpush.msra.mxu0 0.0
    %523 = vmatpush.msra.mxu0 0.0
    %524 = vmatpush.msra.mxu0 0.0
    %525 = vmatpush.msra.mxu0 0.0
    %526 = vmatpush.msra.mxu0 0.0
    %527 = vmatpush.msra.mxu0 %v478
    %528 = vmatpush.msra.mxu0 %v477
    %529 = vmatpush.msra.mxu0 %v476
    %530 = vmatpush.msra.mxu0 %v475
    %531 = vmatmul.f32.gmra.mxu0 %v306
    %v532 = vpop.f32.mrf.mxu0
    %v533 = vadd.f32 %v513, %v532
    %534 = vdwg.mxu0
    %v535 = vld [vmem:[%s47] sm:$0xff]
    %v536 = vld [vmem:[%s47 + $0x8] sm:$0xff]
    %v537 = vld [vmem:[%s47 + $0x10] sm:$0xff]
    %v538 = vld [vmem:[%s47 + $0x18] sm:$0xff]
    %v539 = vld [vmem:[%s47 + $0x20] sm:$0xff]
    %v540 = vld [vmem:[%s47 + $0x28] sm:$0xff]
    %v541 = vld [vmem:[%s47 + $0x30] sm:$0xff]
    %v542 = vld [vmem:[%s47 + $0x38] sm:$0xff]
    %v543 = vld [vmem:[%s47 + $0x40] sm:$0xff]
    %v544 = vld [vmem:[%s47 + $0x48] sm:$0xff]
    %v545 = vld [vmem:[%s47 + $0x50] sm:$0xff]
    %v546 = vld [vmem:[%s47 + $0x58] sm:$0xff]
    %v547 = vld [vmem:[%s47 + $0x60] sm:$0xff]
    %v548 = vld [vmem:[%s47 + $0x68] sm:$0xff]
    %v549 = vld [vmem:[%s47 + $0x70] sm:$0xff]
    %v550 = vld [vmem:[%s47 + $0x78] sm:$0xff]
    %551 = vmatpush.msra.mxu0 %v550
    %552 = vmatpush.msra.mxu0 %v549
    %553 = vmatpush.msra.mxu0 %v548
    %554 = vmatpush.msra.mxu0 %v547
    %555 = vmatpush.msra.mxu0 %v546
    %556 = vmatpush.msra.mxu0 %v545
    %557 = vmatpush.msra.mxu0 %v544
    %558 = vmatpush.msra.mxu0 %v543
    %559 = vmatpush.msra.mxu0 %v542
    %560 = vmatpush.msra.mxu0 %v541
    %561 = vmatpush.msra.mxu0 %v540
    %562 = vmatpush.msra.mxu0 %v539
    %563 = vmatpush.msra.mxu0 %v538
    %564 = vmatpush.msra.mxu0 %v537
    %565 = vmatpush.msra.mxu0 %v536
    %566 = vmatpush.msra.mxu0 %v535
    %567 = vmatmul.f32.gmra.mxu0 %v264
    %v568 = vpop.f32.mrf.mxu0
    %v569 = vadd.f32 0.0, %v568
    %570 = vdwg.mxu0
    %v571 = vadd.f32 %v533, %v569
    %v572 = vld [vmem:[%s49] sm:$0x1]
    %v574 = vperm.slane %v572, 0
    %v576 = vadd.f32 %v571, %v574
    %v577 = vtanh.pop %v576
    %v578 = vld [vmem:[%s51] sm:$0xff]
    %v579 = vld [vmem:[%s51 + $0x8] sm:$0xff]
    %v580 = vld [vmem:[%s51 + $0x10] sm:$0xff]
    %v581 = vld [vmem:[%s51 + $0x18] sm:$0xff]
    %v582 = vld [vmem:[%s51 + $0x20] sm:$0xff]
    %v583 = vld [vmem:[%s51 + $0x28] sm:$0xff]
    %v584 = vld [vmem:[%s51 + $0x30] sm:$0xff]
    %v585 = vld [vmem:[%s51 + $0x38] sm:$0xff]
    %v586 = vld [vmem:[%s53] sm:$0x1]
    %v588 = vperm.slane %v586, 0
    %v591 = vsel %vm383, %v577, 0
    %593 = vmatpush.msra.mxu0 0.0
    %594 = vmatpush.msra.mxu0 0.0
    %595 = vmatpush.msra.mxu0 0.0
    %596 = vmatpush.msra.mxu0 0.0
    %597 = vmatpush.msra.mxu0 0.0
    %598 = vmatpush.msra.mxu0 0.0
    %599 = vmatpush.msra.mxu0 0.0
    %600 = vmatpush.msra.mxu0 0.0
    %601 = vmatpush.msra.mxu0 %v585
    %602 = vmatpush.msra.mxu0 %v584
    %603 = vmatpush.msra.mxu0 %v583
    %604 = vmatpush.msra.mxu0 %v582
    %605 = vmatpush.msra.mxu0 %v581
    %606 = vmatpush.msra.mxu0 %v580
    %607 = vmatpush.msra.mxu0 %v579
    %608 = vmatpush.msra.mxu0 %v578
    %609 = vmatmul.f32.gmra.mxu0 %v591
    %v610 = vpop.f32.mrf.mxu0
    %v611 = vadd.f32 %v588, %v610
    %612 = vdwg.mxu0
    %v613 = vtanh.pop %v611
    %v614 = vld [vmem:[%s55] sm:$0xff]
    %v615 = vld [vmem:[%s55 + $0x8] sm:$0xff]
    %v616 = vld [vmem:[%s55 + $0x10] sm:$0xff]
    %v617 = vld [vmem:[%s55 + $0x18] sm:$0xff]
    %v618 = vld [vmem:[%s55 + $0x20] sm:$0xff]
    %v619 = vld [vmem:[%s55 + $0x28] sm:$0xff]
    %v620 = vld [vmem:[%s55 + $0x30] sm:$0xff]
    %v621 = vld [vmem:[%s55 + $0x38] sm:$0xff]
    %v622 = vld [vmem:[%s57] sm:$0x1]
    %v624 = vperm.slane %v622, 0
    %v627 = vsel %vm383, %v613, 0
    %629 = vmatpush.msra.mxu0 0.0
    %630 = vmatpush.msra.mxu0 0.0
    %631 = vmatpush.msra.mxu0 0.0
    %632 = vmatpush.msra.mxu0 0.0
    %633 = vmatpush.msra.mxu0 0.0
    %634 = vmatpush.msra.mxu0 0.0
    %635 = vmatpush.msra.mxu0 0.0
    %636 = vmatpush.msra.mxu0 0.0
    %637 = vmatpush.msra.mxu0 %v621
    %638 = vmatpush.msra.mxu0 %v620
    %639 = vmatpush.msra.mxu0 %v619
    %640 = vmatpush.msra.mxu0 %v618
    %641 = vmatpush.msra.mxu0 %v617
    %642 = vmatpush.msra.mxu0 %v616
    %643 = vmatpush.msra.mxu0 %v615
    %644 = vmatpush.msra.mxu0 %v614
    %645 = vmatmul.f32.gmra.mxu0 %v627
    %v646 = vpop.f32.mrf.mxu0
    %v647 = vadd.f32 %v624, %v646
    %648 = vdwg.mxu0
    %v649 = vtanh.pop %v647
    %v650 = vld [vmem:[%s59] sm:$0xff]
    %v651 = vld [vmem:[%s59 + $0x8] sm:$0xff]
    %v652 = vld [vmem:[%s59 + $0x10] sm:$0xff]
    %v653 = vld [vmem:[%s59 + $0x18] sm:$0xff]
    %v654 = vld [vmem:[%s61] sm:$0x1]
    %v656 = vsel %vm173, %v649, 0
    %658 = vmatpush.msra.mxu0 0.0
    %659 = vmatpush.msra.mxu0 0.0
    %660 = vmatpush.msra.mxu0 0.0
    %661 = vmatpush.msra.mxu0 0.0
    %662 = vmatpush.msra.mxu0 0.0
    %663 = vmatpush.msra.mxu0 0.0
    %664 = vmatpush.msra.mxu0 0.0
    %665 = vmatpush.msra.mxu0 0.0
    %666 = vmatpush.msra.mxu0 0.0
    %667 = vmatpush.msra.mxu0 0.0
    %668 = vmatpush.msra.mxu0 0.0
    %669 = vmatpush.msra.mxu0 0.0
    %670 = vmatpush.msra.mxu0 %v653
    %671 = vmatpush.msra.mxu0 %v652
    %672 = vmatpush.msra.mxu0 %v651
    %673 = vmatpush.msra.mxu0 %v650
    %674 = vmatmul.f32.gmra.mxu0 %v656
    %v675 = vpop.f32.mrf.mxu0
    %v676 = vadd.f32 0.0, %v675
    %677 = vdwg.mxu0
    %v678 = vadd.f32 %v473, %v676
    %v680 = vperm.slane %v654, 0
    %v682 = vadd.f32 %v678, %v680
    %v683 = vadd.f32 %v682, %v197
    %v684 = vadd.f32 %v683, %v264
    %685 = vst [vmem:[#allocation2] sm:$0x3] %v684
    // Predicated region
    $region126: #{tpu_custom_call.1} parent=1 // pred_check
      _
    $region127: #{tpu_custom_call.1} parent=1 // pred_check_branch
      %687 = sbr.rel (0) target = $region129
    $region128: #{tpu_custom_call.1} parent=1 // pred_region
      %689 = vsyncadd [#allocation3], 0
      %s691 = sshll.u32 [#allocation2], 4
      %s692 = int_to_ptr.vmem [resolvable:$true] %s691
      %s693 = sshll.u32 %s63, 4
      %s694 = int_to_ptr.hbm [resolvable:$true] %s693
      %696 = dma.vmem_to_hbm [thread:$0]  %s692, 32, %s694, [#allocation3]
    $region129: #{tpu_custom_call.1} parent=1 // pred_fallthru
      _
    // Predicated region
    $region130: #{tpu_custom_call.1} parent=1 // pred_check
      _
    $region131: #{tpu_custom_call.1} parent=1 // pred_check_branch
      %698 = sbr.rel (0) target = $region133
    $region132: #{tpu_custom_call.1} parent=1 // pred_region
      %700 = dma.done [#allocation3], 32
    $region133: #{tpu_custom_call.1} parent=1 // pred_fallthru
      _
    %701 = vsyncpa [#allocation3], 1

</llo_original>
